<compile_context>
chip_gen: v6e
topology: v6e:2x2x1
jax: 0.10.0
libtpu: 0.0.40
codegen_flags: <defaults>
</compile_context>

<pallas_src>
import functools
import math

import jax
import jax.numpy as jnp
from jax.experimental import pallas as pl
from jax.experimental.pallas import tpu as pltpu


def _conlevel_kernel(x_ref, w_ref, scale_ref, shift_ref, out_ref,
                     *, B, inC, outC, H, K, Wp):
    # x_ref:     (B, inC, (H+2P+1)*Wp) zero-padded planes, rows flattened (stride Wp)
    # w_ref:     (K*K, outC, inC)      tap-major conv weights
    # scale_ref: (outC, 1)             folded BN scale  = gamma / sqrt(var + eps)
    # shift_ref: (outC, 1)             folded BN shift  = scale*(bias - mean) + beta
    # out_ref:   (B, outC, H*Wp)       conv + BN + ReLU (junk pad columns included)
    acc_w = H * Wp
    scale = scale_ref[...]
    shift = shift_ref[...]

    accs = [jnp.zeros((outC, acc_w), jnp.float32) for _ in range(B)]
    # K*K taps; each tap is a static lane offset into the flattened padded rows.
    # Loop order (tap, in-channel, batch) so each weight column load is reused
    # across the batch. Fully unrolled; the LLO scheduler interleaves the MACs.
    for kh in range(K):
        for kw in range(K):
            t = kh * K + kw
            off = kh * Wp + kw
            for i in range(inC):
                wcol = w_ref[t, :, i:i + 1]                       # (outC, 1)
                for b in range(B):
                    row = x_ref[b, i:i + 1, off:off + acc_w]      # (1, acc_w)
                    accs[b] = accs[b] + wcol * row                # (outC, acc_w)

    for b in range(B):
        y = accs[b] * scale + shift           # fused conv-bias + BatchNorm
        out_ref[b] = jnp.maximum(y, 0.0).astype(out_ref.dtype)    # ReLU


def _round_up(v, m):
    return ((v + m - 1) // m) * m


@jax.jit
def conlevel_pallas(x, w, bias, gamma, beta, running_mean, running_var, eps=1e-5):
    """x: (B, inC, H, W); w: (outC, inC, K, K); bias/gamma/beta/mean/var: (outC,)."""
    B, inC, H, W = x.shape
    outC = w.shape[0]
    K = w.shape[-1]
    assert K % 2 == 1, "ConLevel uses padding = Fsize // 2 with odd Fsize"
    P = K // 2

    # Padded row width. Round up (when cheap) so the flattened lane width
    # H*Wp is a multiple of 128 -> unmasked, lane-aligned vector stores.
    Wp_min = W + 2 * P
    lane_step = 128 // math.gcd(H, 128)
    Wp = _round_up(Wp_min, lane_step)
    if Wp > max(2 * Wp_min, Wp_min + 16):   # don't blow up memory for odd shapes
        Wp = Wp_min

    acc_w = H * Wp                          # lane-dense accumulator / output width
    rows_p = H + 2 * P + 1                  # +1 extra zero row: widest tap at the
    flat_len = rows_p * Wp                  # last junk column never reads OOB

    # Zero-pad once and flatten the padded rows. Only this single padded copy
    # of x is streamed into the kernel.
    xpad = jnp.pad(x.astype(jnp.float32),
                   ((0, 0), (0, 0), (P, P + 1), (P, Wp - W - P)))
    xflat = xpad.reshape(B, inC, flat_len)

    # Tap-major weights: w_taps[kh*K + kw] is the (outC, inC) channel-mix matrix.
    w_taps = jnp.transpose(w.astype(jnp.float32), (2, 3, 0, 1)).reshape(K * K, outC, inC)

    # Fold conv bias + eval-mode BatchNorm into one per-channel scale/shift.
    # TODO(synk): training-mode BatchNorm (batch statistics + running-stat
    # update) is not fused; this kernel implements the eval-mode forward.
    scale = (gamma / jnp.sqrt(running_var + eps)).astype(jnp.float32)
    shift = (scale * (bias - running_mean) + beta).astype(jnp.float32)
    scale = scale.reshape(outC, 1)
    shift = shift.reshape(outC, 1)

    kernel = functools.partial(_conlevel_kernel,
                               B=B, inC=inC, outC=outC, H=H, K=K, Wp=Wp)

    out_flat = pl.pallas_call(
        kernel,
        out_shape=jax.ShapeDtypeStruct((B, outC, acc_w), jnp.float32),
        grid=(1,),   # single step: the whole problem fits one invocation
        in_specs=[
            pl.BlockSpec((B, inC, flat_len), lambda i: (0, 0, 0)),   # padded planes
            pl.BlockSpec((K * K, outC, inC), lambda i: (0, 0, 0)),   # weights (VMEM)
            pl.BlockSpec((outC, 1), lambda i: (0, 0)),               # BN scale
            pl.BlockSpec((outC, 1), lambda i: (0, 0)),               # BN shift
        ],
        out_specs=pl.BlockSpec((B, outC, acc_w), lambda i: (0, 0, 0)),
        compiler_params=pltpu.CompilerParams(dimension_semantics=("arbitrary",)),
    )(xflat, w_taps, scale, shift)

    # Strip the pad columns: flat position y*Wp + x  ->  pixel (y, x), keep x < W.
    return out_flat.reshape(B, outC, H, Wp)[:, :, :, :W]


def conlevel_ref(x, w, bias, gamma, beta, running_mean, running_var, eps=1e-5):
    """Pure-JAX reference matching the PyTorch eval-mode forward."""
    P = w.shape[-1] // 2
    conv = jax.lax.conv_general_dilated(
        x, w, window_strides=(1, 1), padding=((P, P), (P, P)),
        dimension_numbers=("NCHW", "OIHW", "NCHW"),
        precision=jax.lax.Precision.HIGHEST)
    conv = conv + bias.reshape(1, -1, 1, 1)
    inv_std = jax.lax.rsqrt(running_var + eps).reshape(1, -1, 1, 1)
    bn = ((conv - running_mean.reshape(1, -1, 1, 1)) * inv_std
          * gamma.reshape(1, -1, 1, 1) + beta.reshape(1, -1, 1, 1))
    return jnp.maximum(bn, 0.0)


if __name__ == "__main__":
    Fsize, inC, outC = 3, 4, 8
    B, H, W = 2, 16, 16

    key = jax.random.PRNGKey(0)
    kx, kw, kb, kg, kbe, km, kv = jax.random.split(key, 7)
    x = jax.random.normal(kx, (B, inC, H, W), dtype=jnp.float32)
    w = 0.1 * jax.random.normal(kw, (outC, inC, Fsize, Fsize), dtype=jnp.float32)
    bias = 0.1 * jax.random.normal(kb, (outC,), dtype=jnp.float32)
    gamma = 1.0 + 0.1 * jax.random.normal(kg, (outC,), dtype=jnp.float32)
    beta = 0.1 * jax.random.normal(kbe, (outC,), dtype=jnp.float32)
    running_mean = 0.1 * jax.random.normal(km, (outC,), dtype=jnp.float32)
    running_var = 1.0 + 0.5 * jax.random.uniform(kv, (outC,), dtype=jnp.float32)

    out = conlevel_pallas(x, w, bias, gamma, beta, running_mean, running_var)
    out = jax.block_until_ready(out)

    ref = conlevel_ref(x, w, bias, gamma, beta, running_mean, running_var)
    assert out.shape == (B, outC, H, W)
    assert jnp.allclose(out, ref, atol=1e-4, rtol=1e-4), "mismatch vs reference"

    print("KERNEL_OK")
</pallas_src>

<mosaic_0001>
module attributes {stable_mosaic.version = 11 : i64} {
  func.func @_conlevel_kernel(%arg0: i32, %arg1: memref<2x4x456xf32, #tpu.memory_space<vmem>>, %arg2: memref<9x8x4xf32, #tpu.memory_space<vmem>>, %arg3: memref<8x1xf32, #tpu.memory_space<vmem>>, %arg4: memref<8x1xf32, #tpu.memory_space<vmem>>, %arg5: memref<2x8x384xf32, #tpu.memory_space<vmem>>) attributes {dimension_semantics = [#tpu.dimension_semantics<arbitrary>], iteration_bounds = array<i64: 1>, scalar_prefetch = 0 : i64, scratch_operands = 0 : i64, tpu.core_type = #tpu.core_type<tc>, window_params = [{pipeline_mode = #tpu.pipeline_mode<synchronous>, transform_indices = @transform_0, window_bounds = array<i64: 2, 4, 456>}, {pipeline_mode = #tpu.pipeline_mode<synchronous>, transform_indices = @transform_1, window_bounds = array<i64: 9, 8, 4>}, {pipeline_mode = #tpu.pipeline_mode<synchronous>, transform_indices = @transform_2, window_bounds = array<i64: 8, 1>}, {pipeline_mode = #tpu.pipeline_mode<synchronous>, transform_indices = @transform_3, window_bounds = array<i64: 8, 1>}, {pipeline_mode = #tpu.pipeline_mode<synchronous>, transform_indices = @transform_4, window_bounds = array<i64: 2, 8, 384>}]} {
    %c0 = arith.constant 0 : index
    %c0_0 = arith.constant 0 : index
    %0 = vector.load %arg3[%c0, %c0_0] : memref<8x1xf32, #tpu.memory_space<vmem>>, vector<8x1xf32>
    %c0_1 = arith.constant 0 : index
    %c0_2 = arith.constant 0 : index
    %1 = vector.load %arg4[%c0_1, %c0_2] : memref<8x1xf32, #tpu.memory_space<vmem>>, vector<8x1xf32>
    %cst = arith.constant 0.000000e+00 : f32
    %2 = vector.broadcast %cst : f32 to vector<8x384xf32>
    %cst_3 = arith.constant 0.000000e+00 : f32
    %3 = vector.broadcast %cst_3 : f32 to vector<8x384xf32>
    %c0_4 = arith.constant 0 : index
    %c0_5 = arith.constant 0 : index
    %c0_6 = arith.constant 0 : index
    %4 = vector.load %arg2[%c0_4, %c0_5, %c0_6] : memref<9x8x4xf32, #tpu.memory_space<vmem>>, vector<1x8x1xf32>
    %5 = vector.shape_cast %4 : vector<1x8x1xf32> to vector<8x1xf32>
    %c0_7 = arith.constant 0 : index
    %c0_8 = arith.constant 0 : index
    %c0_9 = arith.constant 0 : index
    %6 = vector.load %arg1[%c0_7, %c0_8, %c0_9] : memref<2x4x456xf32, #tpu.memory_space<vmem>>, vector<1x1x384xf32>
    %7 = vector.shape_cast %6 : vector<1x1x384xf32> to vector<1x384xf32>
    %8 = vector.broadcast %5 : vector<8x1xf32> to vector<8x384xf32>
    %9 = vector.broadcast %7 : vector<1x384xf32> to vector<8x384xf32>
    %10 = arith.mulf %8, %9 : vector<8x384xf32>
    %11 = arith.addf %2, %10 : vector<8x384xf32>
    %c1 = arith.constant 1 : index
    %c0_10 = arith.constant 0 : index
    %c0_11 = arith.constant 0 : index
    %12 = vector.load %arg1[%c1, %c0_10, %c0_11] : memref<2x4x456xf32, #tpu.memory_space<vmem>>, vector<1x1x384xf32>
    %13 = vector.shape_cast %12 : vector<1x1x384xf32> to vector<1x384xf32>
    %14 = vector.broadcast %5 : vector<8x1xf32> to vector<8x384xf32>
    %15 = vector.broadcast %13 : vector<1x384xf32> to vector<8x384xf32>
    %16 = arith.mulf %14, %15 : vector<8x384xf32>
    %17 = arith.addf %3, %16 : vector<8x384xf32>
    %c0_12 = arith.constant 0 : index
    %c0_13 = arith.constant 0 : index
    %c1_14 = arith.constant 1 : index
    %18 = vector.load %arg2[%c0_12, %c0_13, %c1_14] : memref<9x8x4xf32, #tpu.memory_space<vmem>>, vector<1x8x1xf32>
    %19 = vector.shape_cast %18 : vector<1x8x1xf32> to vector<8x1xf32>
    %c0_15 = arith.constant 0 : index
    %c1_16 = arith.constant 1 : index
    %c0_17 = arith.constant 0 : index
    %20 = vector.load %arg1[%c0_15, %c1_16, %c0_17] : memref<2x4x456xf32, #tpu.memory_space<vmem>>, vector<1x1x384xf32>
    %21 = vector.shape_cast %20 : vector<1x1x384xf32> to vector<1x384xf32>
    %22 = vector.broadcast %19 : vector<8x1xf32> to vector<8x384xf32>
    %23 = vector.broadcast %21 : vector<1x384xf32> to vector<8x384xf32>
    %24 = arith.mulf %22, %23 : vector<8x384xf32>
    %25 = arith.addf %11, %24 : vector<8x384xf32>
    %c1_18 = arith.constant 1 : index
    %c1_19 = arith.constant 1 : index
    %c0_20 = arith.constant 0 : index
    %26 = vector.load %arg1[%c1_18, %c1_19, %c0_20] : memref<2x4x456xf32, #tpu.memory_space<vmem>>, vector<1x1x384xf32>
    %27 = vector.shape_cast %26 : vector<1x1x384xf32> to vector<1x384xf32>
    %28 = vector.broadcast %19 : vector<8x1xf32> to vector<8x384xf32>
    %29 = vector.broadcast %27 : vector<1x384xf32> to vector<8x384xf32>
    %30 = arith.mulf %28, %29 : vector<8x384xf32>
    %31 = arith.addf %17, %30 : vector<8x384xf32>
    %c0_21 = arith.constant 0 : index
    %c0_22 = arith.constant 0 : index
    %c2 = arith.constant 2 : index
    %32 = vector.load %arg2[%c0_21, %c0_22, %c2] : memref<9x8x4xf32, #tpu.memory_space<vmem>>, vector<1x8x1xf32>
    %33 = vector.shape_cast %32 : vector<1x8x1xf32> to vector<8x1xf32>
    %c0_23 = arith.constant 0 : index
    %c2_24 = arith.constant 2 : index
    %c0_25 = arith.constant 0 : index
    %34 = vector.load %arg1[%c0_23, %c2_24, %c0_25] : memref<2x4x456xf32, #tpu.memory_space<vmem>>, vector<1x1x384xf32>
    %35 = vector.shape_cast %34 : vector<1x1x384xf32> to vector<1x384xf32>
    %36 = vector.broadcast %33 : vector<8x1xf32> to vector<8x384xf32>
    %37 = vector.broadcast %35 : vector<1x384xf32> to vector<8x384xf32>
    %38 = arith.mulf %36, %37 : vector<8x384xf32>
    %39 = arith.addf %25, %38 : vector<8x384xf32>
    %c1_26 = arith.constant 1 : index
    %c2_27 = arith.constant 2 : index
    %c0_28 = arith.constant 0 : index
    %40 = vector.load %arg1[%c1_26, %c2_27, %c0_28] : memref<2x4x456xf32, #tpu.memory_space<vmem>>, vector<1x1x384xf32>
    %41 = vector.shape_cast %40 : vector<1x1x384xf32> to vector<1x384xf32>
    %42 = vector.broadcast %33 : vector<8x1xf32> to vector<8x384xf32>
    %43 = vector.broadcast %41 : vector<1x384xf32> to vector<8x384xf32>
    %44 = arith.mulf %42, %43 : vector<8x384xf32>
    %45 = arith.addf %31, %44 : vector<8x384xf32>
    %c0_29 = arith.constant 0 : index
    %c0_30 = arith.constant 0 : index
    %c3 = arith.constant 3 : index
    %46 = vector.load %arg2[%c0_29, %c0_30, %c3] : memref<9x8x4xf32, #tpu.memory_space<vmem>>, vector<1x8x1xf32>
    %47 = vector.shape_cast %46 : vector<1x8x1xf32> to vector<8x1xf32>
    %c0_31 = arith.constant 0 : index
    %c3_32 = arith.constant 3 : index
    %c0_33 = arith.constant 0 : index
    %48 = vector.load %arg1[%c0_31, %c3_32, %c0_33] : memref<2x4x456xf32, #tpu.memory_space<vmem>>, vector<1x1x384xf32>
    %49 = vector.shape_cast %48 : vector<1x1x384xf32> to vector<1x384xf32>
    %50 = vector.broadcast %47 : vector<8x1xf32> to vector<8x384xf32>
    %51 = vector.broadcast %49 : vector<1x384xf32> to vector<8x384xf32>
    %52 = arith.mulf %50, %51 : vector<8x384xf32>
    %53 = arith.addf %39, %52 : vector<8x384xf32>
    %c1_34 = arith.constant 1 : index
    %c3_35 = arith.constant 3 : index
    %c0_36 = arith.constant 0 : index
    %54 = vector.load %arg1[%c1_34, %c3_35, %c0_36] : memref<2x4x456xf32, #tpu.memory_space<vmem>>, vector<1x1x384xf32>
    %55 = vector.shape_cast %54 : vector<1x1x384xf32> to vector<1x384xf32>
    %56 = vector.broadcast %47 : vector<8x1xf32> to vector<8x384xf32>
    %57 = vector.broadcast %55 : vector<1x384xf32> to vector<8x384xf32>
    %58 = arith.mulf %56, %57 : vector<8x384xf32>
    %59 = arith.addf %45, %58 : vector<8x384xf32>
    %c1_37 = arith.constant 1 : index
    %c0_38 = arith.constant 0 : index
    %c0_39 = arith.constant 0 : index
    %60 = vector.load %arg2[%c1_37, %c0_38, %c0_39] : memref<9x8x4xf32, #tpu.memory_space<vmem>>, vector<1x8x1xf32>
    %61 = vector.shape_cast %60 : vector<1x8x1xf32> to vector<8x1xf32>
    %c0_40 = arith.constant 0 : index
    %c0_41 = arith.constant 0 : index
    %c1_42 = arith.constant 1 : index
    %62 = vector.load %arg1[%c0_40, %c0_41, %c1_42] : memref<2x4x456xf32, #tpu.memory_space<vmem>>, vector<1x1x384xf32>
    %63 = vector.shape_cast %62 : vector<1x1x384xf32> to vector<1x384xf32>
    %64 = vector.broadcast %61 : vector<8x1xf32> to vector<8x384xf32>
    %65 = vector.broadcast %63 : vector<1x384xf32> to vector<8x384xf32>
    %66 = arith.mulf %64, %65 : vector<8x384xf32>
    %67 = arith.addf %53, %66 : vector<8x384xf32>
    %c1_43 = arith.constant 1 : index
    %c0_44 = arith.constant 0 : index
    %c1_45 = arith.constant 1 : index
    %68 = vector.load %arg1[%c1_43, %c0_44, %c1_45] : memref<2x4x456xf32, #tpu.memory_space<vmem>>, vector<1x1x384xf32>
    %69 = vector.shape_cast %68 : vector<1x1x384xf32> to vector<1x384xf32>
    %70 = vector.broadcast %61 : vector<8x1xf32> to vector<8x384xf32>
    %71 = vector.broadcast %69 : vector<1x384xf32> to vector<8x384xf32>
    %72 = arith.mulf %70, %71 : vector<8x384xf32>
    %73 = arith.addf %59, %72 : vector<8x384xf32>
    %c1_46 = arith.constant 1 : index
    %c0_47 = arith.constant 0 : index
    %c1_48 = arith.constant 1 : index
    %74 = vector.load %arg2[%c1_46, %c0_47, %c1_48] : memref<9x8x4xf32, #tpu.memory_space<vmem>>, vector<1x8x1xf32>
    %75 = vector.shape_cast %74 : vector<1x8x1xf32> to vector<8x1xf32>
    %c0_49 = arith.constant 0 : index
    %c1_50 = arith.constant 1 : index
    %c1_51 = arith.constant 1 : index
    %76 = vector.load %arg1[%c0_49, %c1_50, %c1_51] : memref<2x4x456xf32, #tpu.memory_space<vmem>>, vector<1x1x384xf32>
    %77 = vector.shape_cast %76 : vector<1x1x384xf32> to vector<1x384xf32>
    %78 = vector.broadcast %75 : vector<8x1xf32> to vector<8x384xf32>
    %79 = vector.broadcast %77 : vector<1x384xf32> to vector<8x384xf32>
    %80 = arith.mulf %78, %79 : vector<8x384xf32>
    %81 = arith.addf %67, %80 : vector<8x384xf32>
    %c1_52 = arith.constant 1 : index
    %c1_53 = arith.constant 1 : index
    %c1_54 = arith.constant 1 : index
    %82 = vector.load %arg1[%c1_52, %c1_53, %c1_54] : memref<2x4x456xf32, #tpu.memory_space<vmem>>, vector<1x1x384xf32>
    %83 = vector.shape_cast %82 : vector<1x1x384xf32> to vector<1x384xf32>
    %84 = vector.broadcast %75 : vector<8x1xf32> to vector<8x384xf32>
    %85 = vector.broadcast %83 : vector<1x384xf32> to vector<8x384xf32>
    %86 = arith.mulf %84, %85 : vector<8x384xf32>
    %87 = arith.addf %73, %86 : vector<8x384xf32>
    %c1_55 = arith.constant 1 : index
    %c0_56 = arith.constant 0 : index
    %c2_57 = arith.constant 2 : index
    %88 = vector.load %arg2[%c1_55, %c0_56, %c2_57] : memref<9x8x4xf32, #tpu.memory_space<vmem>>, vector<1x8x1xf32>
    %89 = vector.shape_cast %88 : vector<1x8x1xf32> to vector<8x1xf32>
    %c0_58 = arith.constant 0 : index
    %c2_59 = arith.constant 2 : index
    %c1_60 = arith.constant 1 : index
    %90 = vector.load %arg1[%c0_58, %c2_59, %c1_60] : memref<2x4x456xf32, #tpu.memory_space<vmem>>, vector<1x1x384xf32>
    %91 = vector.shape_cast %90 : vector<1x1x384xf32> to vector<1x384xf32>
    %92 = vector.broadcast %89 : vector<8x1xf32> to vector<8x384xf32>
    %93 = vector.broadcast %91 : vector<1x384xf32> to vector<8x384xf32>
    %94 = arith.mulf %92, %93 : vector<8x384xf32>
    %95 = arith.addf %81, %94 : vector<8x384xf32>
    %c1_61 = arith.constant 1 : index
    %c2_62 = arith.constant 2 : index
    %c1_63 = arith.constant 1 : index
    %96 = vector.load %arg1[%c1_61, %c2_62, %c1_63] : memref<2x4x456xf32, #tpu.memory_space<vmem>>, vector<1x1x384xf32>
    %97 = vector.shape_cast %96 : vector<1x1x384xf32> to vector<1x384xf32>
    %98 = vector.broadcast %89 : vector<8x1xf32> to vector<8x384xf32>
    %99 = vector.broadcast %97 : vector<1x384xf32> to vector<8x384xf32>
    %100 = arith.mulf %98, %99 : vector<8x384xf32>
    %101 = arith.addf %87, %100 : vector<8x384xf32>
    %c1_64 = arith.constant 1 : index
    %c0_65 = arith.constant 0 : index
    %c3_66 = arith.constant 3 : index
    %102 = vector.load %arg2[%c1_64, %c0_65, %c3_66] : memref<9x8x4xf32, #tpu.memory_space<vmem>>, vector<1x8x1xf32>
    %103 = vector.shape_cast %102 : vector<1x8x1xf32> to vector<8x1xf32>
    %c0_67 = arith.constant 0 : index
    %c3_68 = arith.constant 3 : index
    %c1_69 = arith.constant 1 : index
    %104 = vector.load %arg1[%c0_67, %c3_68, %c1_69] : memref<2x4x456xf32, #tpu.memory_space<vmem>>, vector<1x1x384xf32>
    %105 = vector.shape_cast %104 : vector<1x1x384xf32> to vector<1x384xf32>
    %106 = vector.broadcast %103 : vector<8x1xf32> to vector<8x384xf32>
    %107 = vector.broadcast %105 : vector<1x384xf32> to vector<8x384xf32>
    %108 = arith.mulf %106, %107 : vector<8x384xf32>
    %109 = arith.addf %95, %108 : vector<8x384xf32>
    %c1_70 = arith.constant 1 : index
    %c3_71 = arith.constant 3 : index
    %c1_72 = arith.constant 1 : index
    %110 = vector.load %arg1[%c1_70, %c3_71, %c1_72] : memref<2x4x456xf32, #tpu.memory_space<vmem>>, vector<1x1x384xf32>
    %111 = vector.shape_cast %110 : vector<1x1x384xf32> to vector<1x384xf32>
    %112 = vector.broadcast %103 : vector<8x1xf32> to vector<8x384xf32>
    %113 = vector.broadcast %111 : vector<1x384xf32> to vector<8x384xf32>
    %114 = arith.mulf %112, %113 : vector<8x384xf32>
    %115 = arith.addf %101, %114 : vector<8x384xf32>
    %c2_73 = arith.constant 2 : index
    %c0_74 = arith.constant 0 : index
    %c0_75 = arith.constant 0 : index
    %116 = vector.load %arg2[%c2_73, %c0_74, %c0_75] : memref<9x8x4xf32, #tpu.memory_space<vmem>>, vector<1x8x1xf32>
    %117 = vector.shape_cast %116 : vector<1x8x1xf32> to vector<8x1xf32>
    %c0_76 = arith.constant 0 : index
    %c0_77 = arith.constant 0 : index
    %c2_78 = arith.constant 2 : index
    %118 = vector.load %arg1[%c0_76, %c0_77, %c2_78] : memref<2x4x456xf32, #tpu.memory_space<vmem>>, vector<1x1x384xf32>
    %119 = vector.shape_cast %118 : vector<1x1x384xf32> to vector<1x384xf32>
    %120 = vector.broadcast %117 : vector<8x1xf32> to vector<8x384xf32>
    %121 = vector.broadcast %119 : vector<1x384xf32> to vector<8x384xf32>
    %122 = arith.mulf %120, %121 : vector<8x384xf32>
    %123 = arith.addf %109, %122 : vector<8x384xf32>
    %c1_79 = arith.constant 1 : index
    %c0_80 = arith.constant 0 : index
    %c2_81 = arith.constant 2 : index
    %124 = vector.load %arg1[%c1_79, %c0_80, %c2_81] : memref<2x4x456xf32, #tpu.memory_space<vmem>>, vector<1x1x384xf32>
    %125 = vector.shape_cast %124 : vector<1x1x384xf32> to vector<1x384xf32>
    %126 = vector.broadcast %117 : vector<8x1xf32> to vector<8x384xf32>
    %127 = vector.broadcast %125 : vector<1x384xf32> to vector<8x384xf32>
    %128 = arith.mulf %126, %127 : vector<8x384xf32>
    %129 = arith.addf %115, %128 : vector<8x384xf32>
    %c2_82 = arith.constant 2 : index
    %c0_83 = arith.constant 0 : index
    %c1_84 = arith.constant 1 : index
    %130 = vector.load %arg2[%c2_82, %c0_83, %c1_84] : memref<9x8x4xf32, #tpu.memory_space<vmem>>, vector<1x8x1xf32>
    %131 = vector.shape_cast %130 : vector<1x8x1xf32> to vector<8x1xf32>
    %c0_85 = arith.constant 0 : index
    %c1_86 = arith.constant 1 : index
    %c2_87 = arith.constant 2 : index
    %132 = vector.load %arg1[%c0_85, %c1_86, %c2_87] : memref<2x4x456xf32, #tpu.memory_space<vmem>>, vector<1x1x384xf32>
    %133 = vector.shape_cast %132 : vector<1x1x384xf32> to vector<1x384xf32>
    %134 = vector.broadcast %131 : vector<8x1xf32> to vector<8x384xf32>
    %135 = vector.broadcast %133 : vector<1x384xf32> to vector<8x384xf32>
    %136 = arith.mulf %134, %135 : vector<8x384xf32>
    %137 = arith.addf %123, %136 : vector<8x384xf32>
    %c1_88 = arith.constant 1 : index
    %c1_89 = arith.constant 1 : index
    %c2_90 = arith.constant 2 : index
    %138 = vector.load %arg1[%c1_88, %c1_89, %c2_90] : memref<2x4x456xf32, #tpu.memory_space<vmem>>, vector<1x1x384xf32>
    %139 = vector.shape_cast %138 : vector<1x1x384xf32> to vector<1x384xf32>
    %140 = vector.broadcast %131 : vector<8x1xf32> to vector<8x384xf32>
    %141 = vector.broadcast %139 : vector<1x384xf32> to vector<8x384xf32>
    %142 = arith.mulf %140, %141 : vector<8x384xf32>
    %143 = arith.addf %129, %142 : vector<8x384xf32>
    %c2_91 = arith.constant 2 : index
    %c0_92 = arith.constant 0 : index
    %c2_93 = arith.constant 2 : index
    %144 = vector.load %arg2[%c2_91, %c0_92, %c2_93] : memref<9x8x4xf32, #tpu.memory_space<vmem>>, vector<1x8x1xf32>
    %145 = vector.shape_cast %144 : vector<1x8x1xf32> to vector<8x1xf32>
    %c0_94 = arith.constant 0 : index
    %c2_95 = arith.constant 2 : index
    %c2_96 = arith.constant 2 : index
    %146 = vector.load %arg1[%c0_94, %c2_95, %c2_96] : memref<2x4x456xf32, #tpu.memory_space<vmem>>, vector<1x1x384xf32>
    %147 = vector.shape_cast %146 : vector<1x1x384xf32> to vector<1x384xf32>
    %148 = vector.broadcast %145 : vector<8x1xf32> to vector<8x384xf32>
    %149 = vector.broadcast %147 : vector<1x384xf32> to vector<8x384xf32>
    %150 = arith.mulf %148, %149 : vector<8x384xf32>
    %151 = arith.addf %137, %150 : vector<8x384xf32>
    %c1_97 = arith.constant 1 : index
    %c2_98 = arith.constant 2 : index
    %c2_99 = arith.constant 2 : index
    %152 = vector.load %arg1[%c1_97, %c2_98, %c2_99] : memref<2x4x456xf32, #tpu.memory_space<vmem>>, vector<1x1x384xf32>
    %153 = vector.shape_cast %152 : vector<1x1x384xf32> to vector<1x384xf32>
    %154 = vector.broadcast %145 : vector<8x1xf32> to vector<8x384xf32>
    %155 = vector.broadcast %153 : vector<1x384xf32> to vector<8x384xf32>
    %156 = arith.mulf %154, %155 : vector<8x384xf32>
    %157 = arith.addf %143, %156 : vector<8x384xf32>
    %c2_100 = arith.constant 2 : index
    %c0_101 = arith.constant 0 : index
    %c3_102 = arith.constant 3 : index
    %158 = vector.load %arg2[%c2_100, %c0_101, %c3_102] : memref<9x8x4xf32, #tpu.memory_space<vmem>>, vector<1x8x1xf32>
    %159 = vector.shape_cast %158 : vector<1x8x1xf32> to vector<8x1xf32>
    %c0_103 = arith.constant 0 : index
    %c3_104 = arith.constant 3 : index
    %c2_105 = arith.constant 2 : index
    %160 = vector.load %arg1[%c0_103, %c3_104, %c2_105] : memref<2x4x456xf32, #tpu.memory_space<vmem>>, vector<1x1x384xf32>
    %161 = vector.shape_cast %160 : vector<1x1x384xf32> to vector<1x384xf32>
    %162 = vector.broadcast %159 : vector<8x1xf32> to vector<8x384xf32>
    %163 = vector.broadcast %161 : vector<1x384xf32> to vector<8x384xf32>
    %164 = arith.mulf %162, %163 : vector<8x384xf32>
    %165 = arith.addf %151, %164 : vector<8x384xf32>
    %c1_106 = arith.constant 1 : index
    %c3_107 = arith.constant 3 : index
    %c2_108 = arith.constant 2 : index
    %166 = vector.load %arg1[%c1_106, %c3_107, %c2_108] : memref<2x4x456xf32, #tpu.memory_space<vmem>>, vector<1x1x384xf32>
    %167 = vector.shape_cast %166 : vector<1x1x384xf32> to vector<1x384xf32>
    %168 = vector.broadcast %159 : vector<8x1xf32> to vector<8x384xf32>
    %169 = vector.broadcast %167 : vector<1x384xf32> to vector<8x384xf32>
    %170 = arith.mulf %168, %169 : vector<8x384xf32>
    %171 = arith.addf %157, %170 : vector<8x384xf32>
    %c3_109 = arith.constant 3 : index
    %c0_110 = arith.constant 0 : index
    %c0_111 = arith.constant 0 : index
    %172 = vector.load %arg2[%c3_109, %c0_110, %c0_111] : memref<9x8x4xf32, #tpu.memory_space<vmem>>, vector<1x8x1xf32>
    %173 = vector.shape_cast %172 : vector<1x8x1xf32> to vector<8x1xf32>
    %c0_112 = arith.constant 0 : index
    %c0_113 = arith.constant 0 : index
    %c24 = arith.constant 24 : index
    %174 = vector.load %arg1[%c0_112, %c0_113, %c24] : memref<2x4x456xf32, #tpu.memory_space<vmem>>, vector<1x1x384xf32>
    %175 = vector.shape_cast %174 : vector<1x1x384xf32> to vector<1x384xf32>
    %176 = vector.broadcast %173 : vector<8x1xf32> to vector<8x384xf32>
    %177 = vector.broadcast %175 : vector<1x384xf32> to vector<8x384xf32>
    %178 = arith.mulf %176, %177 : vector<8x384xf32>
    %179 = arith.addf %165, %178 : vector<8x384xf32>
    %c1_114 = arith.constant 1 : index
    %c0_115 = arith.constant 0 : index
    %c24_116 = arith.constant 24 : index
    %180 = vector.load %arg1[%c1_114, %c0_115, %c24_116] : memref<2x4x456xf32, #tpu.memory_space<vmem>>, vector<1x1x384xf32>
    %181 = vector.shape_cast %180 : vector<1x1x384xf32> to vector<1x384xf32>
    %182 = vector.broadcast %173 : vector<8x1xf32> to vector<8x384xf32>
    %183 = vector.broadcast %181 : vector<1x384xf32> to vector<8x384xf32>
    %184 = arith.mulf %182, %183 : vector<8x384xf32>
    %185 = arith.addf %171, %184 : vector<8x384xf32>
    %c3_117 = arith.constant 3 : index
    %c0_118 = arith.constant 0 : index
    %c1_119 = arith.constant 1 : index
    %186 = vector.load %arg2[%c3_117, %c0_118, %c1_119] : memref<9x8x4xf32, #tpu.memory_space<vmem>>, vector<1x8x1xf32>
    %187 = vector.shape_cast %186 : vector<1x8x1xf32> to vector<8x1xf32>
    %c0_120 = arith.constant 0 : index
    %c1_121 = arith.constant 1 : index
    %c24_122 = arith.constant 24 : index
    %188 = vector.load %arg1[%c0_120, %c1_121, %c24_122] : memref<2x4x456xf32, #tpu.memory_space<vmem>>, vector<1x1x384xf32>
    %189 = vector.shape_cast %188 : vector<1x1x384xf32> to vector<1x384xf32>
    %190 = vector.broadcast %187 : vector<8x1xf32> to vector<8x384xf32>
    %191 = vector.broadcast %189 : vector<1x384xf32> to vector<8x384xf32>
    %192 = arith.mulf %190, %191 : vector<8x384xf32>
    %193 = arith.addf %179, %192 : vector<8x384xf32>
    %c1_123 = arith.constant 1 : index
    %c1_124 = arith.constant 1 : index
    %c24_125 = arith.constant 24 : index
    %194 = vector.load %arg1[%c1_123, %c1_124, %c24_125] : memref<2x4x456xf32, #tpu.memory_space<vmem>>, vector<1x1x384xf32>
    %195 = vector.shape_cast %194 : vector<1x1x384xf32> to vector<1x384xf32>
    %196 = vector.broadcast %187 : vector<8x1xf32> to vector<8x384xf32>
    %197 = vector.broadcast %195 : vector<1x384xf32> to vector<8x384xf32>
    %198 = arith.mulf %196, %197 : vector<8x384xf32>
    %199 = arith.addf %185, %198 : vector<8x384xf32>
    %c3_126 = arith.constant 3 : index
    %c0_127 = arith.constant 0 : index
    %c2_128 = arith.constant 2 : index
    %200 = vector.load %arg2[%c3_126, %c0_127, %c2_128] : memref<9x8x4xf32, #tpu.memory_space<vmem>>, vector<1x8x1xf32>
    %201 = vector.shape_cast %200 : vector<1x8x1xf32> to vector<8x1xf32>
    %c0_129 = arith.constant 0 : index
    %c2_130 = arith.constant 2 : index
    %c24_131 = arith.constant 24 : index
    %202 = vector.load %arg1[%c0_129, %c2_130, %c24_131] : memref<2x4x456xf32, #tpu.memory_space<vmem>>, vector<1x1x384xf32>
    %203 = vector.shape_cast %202 : vector<1x1x384xf32> to vector<1x384xf32>
    %204 = vector.broadcast %201 : vector<8x1xf32> to vector<8x384xf32>
    %205 = vector.broadcast %203 : vector<1x384xf32> to vector<8x384xf32>
    %206 = arith.mulf %204, %205 : vector<8x384xf32>
    %207 = arith.addf %193, %206 : vector<8x384xf32>
    %c1_132 = arith.constant 1 : index
    %c2_133 = arith.constant 2 : index
    %c24_134 = arith.constant 24 : index
    %208 = vector.load %arg1[%c1_132, %c2_133, %c24_134] : memref<2x4x456xf32, #tpu.memory_space<vmem>>, vector<1x1x384xf32>
    %209 = vector.shape_cast %208 : vector<1x1x384xf32> to vector<1x384xf32>
    %210 = vector.broadcast %201 : vector<8x1xf32> to vector<8x384xf32>
    %211 = vector.broadcast %209 : vector<1x384xf32> to vector<8x384xf32>
    %212 = arith.mulf %210, %211 : vector<8x384xf32>
    %213 = arith.addf %199, %212 : vector<8x384xf32>
    %c3_135 = arith.constant 3 : index
    %c0_136 = arith.constant 0 : index
    %c3_137 = arith.constant 3 : index
    %214 = vector.load %arg2[%c3_135, %c0_136, %c3_137] : memref<9x8x4xf32, #tpu.memory_space<vmem>>, vector<1x8x1xf32>
    %215 = vector.shape_cast %214 : vector<1x8x1xf32> to vector<8x1xf32>
    %c0_138 = arith.constant 0 : index
    %c3_139 = arith.constant 3 : index
    %c24_140 = arith.constant 24 : index
    %216 = vector.load %arg1[%c0_138, %c3_139, %c24_140] : memref<2x4x456xf32, #tpu.memory_space<vmem>>, vector<1x1x384xf32>
    %217 = vector.shape_cast %216 : vector<1x1x384xf32> to vector<1x384xf32>
    %218 = vector.broadcast %215 : vector<8x1xf32> to vector<8x384xf32>
    %219 = vector.broadcast %217 : vector<1x384xf32> to vector<8x384xf32>
    %220 = arith.mulf %218, %219 : vector<8x384xf32>
    %221 = arith.addf %207, %220 : vector<8x384xf32>
    %c1_141 = arith.constant 1 : index
    %c3_142 = arith.constant 3 : index
    %c24_143 = arith.constant 24 : index
    %222 = vector.load %arg1[%c1_141, %c3_142, %c24_143] : memref<2x4x456xf32, #tpu.memory_space<vmem>>, vector<1x1x384xf32>
    %223 = vector.shape_cast %222 : vector<1x1x384xf32> to vector<1x384xf32>
    %224 = vector.broadcast %215 : vector<8x1xf32> to vector<8x384xf32>
    %225 = vector.broadcast %223 : vector<1x384xf32> to vector<8x384xf32>
    %226 = arith.mulf %224, %225 : vector<8x384xf32>
    %227 = arith.addf %213, %226 : vector<8x384xf32>
    %c4 = arith.constant 4 : index
    %c0_144 = arith.constant 0 : index
    %c0_145 = arith.constant 0 : index
    %228 = vector.load %arg2[%c4, %c0_144, %c0_145] : memref<9x8x4xf32, #tpu.memory_space<vmem>>, vector<1x8x1xf32>
    %229 = vector.shape_cast %228 : vector<1x8x1xf32> to vector<8x1xf32>
    %c0_146 = arith.constant 0 : index
    %c0_147 = arith.constant 0 : index
    %c25 = arith.constant 25 : index
    %230 = vector.load %arg1[%c0_146, %c0_147, %c25] : memref<2x4x456xf32, #tpu.memory_space<vmem>>, vector<1x1x384xf32>
    %231 = vector.shape_cast %230 : vector<1x1x384xf32> to vector<1x384xf32>
    %232 = vector.broadcast %229 : vector<8x1xf32> to vector<8x384xf32>
    %233 = vector.broadcast %231 : vector<1x384xf32> to vector<8x384xf32>
    %234 = arith.mulf %232, %233 : vector<8x384xf32>
    %235 = arith.addf %221, %234 : vector<8x384xf32>
    %c1_148 = arith.constant 1 : index
    %c0_149 = arith.constant 0 : index
    %c25_150 = arith.constant 25 : index
    %236 = vector.load %arg1[%c1_148, %c0_149, %c25_150] : memref<2x4x456xf32, #tpu.memory_space<vmem>>, vector<1x1x384xf32>
    %237 = vector.shape_cast %236 : vector<1x1x384xf32> to vector<1x384xf32>
    %238 = vector.broadcast %229 : vector<8x1xf32> to vector<8x384xf32>
    %239 = vector.broadcast %237 : vector<1x384xf32> to vector<8x384xf32>
    %240 = arith.mulf %238, %239 : vector<8x384xf32>
    %241 = arith.addf %227, %240 : vector<8x384xf32>
    %c4_151 = arith.constant 4 : index
    %c0_152 = arith.constant 0 : index
    %c1_153 = arith.constant 1 : index
    %242 = vector.load %arg2[%c4_151, %c0_152, %c1_153] : memref<9x8x4xf32, #tpu.memory_space<vmem>>, vector<1x8x1xf32>
    %243 = vector.shape_cast %242 : vector<1x8x1xf32> to vector<8x1xf32>
    %c0_154 = arith.constant 0 : index
    %c1_155 = arith.constant 1 : index
    %c25_156 = arith.constant 25 : index
    %244 = vector.load %arg1[%c0_154, %c1_155, %c25_156] : memref<2x4x456xf32, #tpu.memory_space<vmem>>, vector<1x1x384xf32>
    %245 = vector.shape_cast %244 : vector<1x1x384xf32> to vector<1x384xf32>
    %246 = vector.broadcast %243 : vector<8x1xf32> to vector<8x384xf32>
    %247 = vector.broadcast %245 : vector<1x384xf32> to vector<8x384xf32>
    %248 = arith.mulf %246, %247 : vector<8x384xf32>
    %249 = arith.addf %235, %248 : vector<8x384xf32>
    %c1_157 = arith.constant 1 : index
    %c1_158 = arith.constant 1 : index
    %c25_159 = arith.constant 25 : index
    %250 = vector.load %arg1[%c1_157, %c1_158, %c25_159] : memref<2x4x456xf32, #tpu.memory_space<vmem>>, vector<1x1x384xf32>
    %251 = vector.shape_cast %250 : vector<1x1x384xf32> to vector<1x384xf32>
    %252 = vector.broadcast %243 : vector<8x1xf32> to vector<8x384xf32>
    %253 = vector.broadcast %251 : vector<1x384xf32> to vector<8x384xf32>
    %254 = arith.mulf %252, %253 : vector<8x384xf32>
    %255 = arith.addf %241, %254 : vector<8x384xf32>
    %c4_160 = arith.constant 4 : index
    %c0_161 = arith.constant 0 : index
    %c2_162 = arith.constant 2 : index
    %256 = vector.load %arg2[%c4_160, %c0_161, %c2_162] : memref<9x8x4xf32, #tpu.memory_space<vmem>>, vector<1x8x1xf32>
    %257 = vector.shape_cast %256 : vector<1x8x1xf32> to vector<8x1xf32>
    %c0_163 = arith.constant 0 : index
    %c2_164 = arith.constant 2 : index
    %c25_165 = arith.constant 25 : index
    %258 = vector.load %arg1[%c0_163, %c2_164, %c25_165] : memref<2x4x456xf32, #tpu.memory_space<vmem>>, vector<1x1x384xf32>
    %259 = vector.shape_cast %258 : vector<1x1x384xf32> to vector<1x384xf32>
    %260 = vector.broadcast %257 : vector<8x1xf32> to vector<8x384xf32>
    %261 = vector.broadcast %259 : vector<1x384xf32> to vector<8x384xf32>
    %262 = arith.mulf %260, %261 : vector<8x384xf32>
    %263 = arith.addf %249, %262 : vector<8x384xf32>
    %c1_166 = arith.constant 1 : index
    %c2_167 = arith.constant 2 : index
    %c25_168 = arith.constant 25 : index
    %264 = vector.load %arg1[%c1_166, %c2_167, %c25_168] : memref<2x4x456xf32, #tpu.memory_space<vmem>>, vector<1x1x384xf32>
    %265 = vector.shape_cast %264 : vector<1x1x384xf32> to vector<1x384xf32>
    %266 = vector.broadcast %257 : vector<8x1xf32> to vector<8x384xf32>
    %267 = vector.broadcast %265 : vector<1x384xf32> to vector<8x384xf32>
    %268 = arith.mulf %266, %267 : vector<8x384xf32>
    %269 = arith.addf %255, %268 : vector<8x384xf32>
    %c4_169 = arith.constant 4 : index
    %c0_170 = arith.constant 0 : index
    %c3_171 = arith.constant 3 : index
    %270 = vector.load %arg2[%c4_169, %c0_170, %c3_171] : memref<9x8x4xf32, #tpu.memory_space<vmem>>, vector<1x8x1xf32>
    %271 = vector.shape_cast %270 : vector<1x8x1xf32> to vector<8x1xf32>
    %c0_172 = arith.constant 0 : index
    %c3_173 = arith.constant 3 : index
    %c25_174 = arith.constant 25 : index
    %272 = vector.load %arg1[%c0_172, %c3_173, %c25_174] : memref<2x4x456xf32, #tpu.memory_space<vmem>>, vector<1x1x384xf32>
    %273 = vector.shape_cast %272 : vector<1x1x384xf32> to vector<1x384xf32>
    %274 = vector.broadcast %271 : vector<8x1xf32> to vector<8x384xf32>
    %275 = vector.broadcast %273 : vector<1x384xf32> to vector<8x384xf32>
    %276 = arith.mulf %274, %275 : vector<8x384xf32>
    %277 = arith.addf %263, %276 : vector<8x384xf32>
    %c1_175 = arith.constant 1 : index
    %c3_176 = arith.constant 3 : index
    %c25_177 = arith.constant 25 : index
    %278 = vector.load %arg1[%c1_175, %c3_176, %c25_177] : memref<2x4x456xf32, #tpu.memory_space<vmem>>, vector<1x1x384xf32>
    %279 = vector.shape_cast %278 : vector<1x1x384xf32> to vector<1x384xf32>
    %280 = vector.broadcast %271 : vector<8x1xf32> to vector<8x384xf32>
    %281 = vector.broadcast %279 : vector<1x384xf32> to vector<8x384xf32>
    %282 = arith.mulf %280, %281 : vector<8x384xf32>
    %283 = arith.addf %269, %282 : vector<8x384xf32>
    %c5 = arith.constant 5 : index
    %c0_178 = arith.constant 0 : index
    %c0_179 = arith.constant 0 : index
    %284 = vector.load %arg2[%c5, %c0_178, %c0_179] : memref<9x8x4xf32, #tpu.memory_space<vmem>>, vector<1x8x1xf32>
    %285 = vector.shape_cast %284 : vector<1x8x1xf32> to vector<8x1xf32>
    %c0_180 = arith.constant 0 : index
    %c0_181 = arith.constant 0 : index
    %c26 = arith.constant 26 : index
    %286 = vector.load %arg1[%c0_180, %c0_181, %c26] : memref<2x4x456xf32, #tpu.memory_space<vmem>>, vector<1x1x384xf32>
    %287 = vector.shape_cast %286 : vector<1x1x384xf32> to vector<1x384xf32>
    %288 = vector.broadcast %285 : vector<8x1xf32> to vector<8x384xf32>
    %289 = vector.broadcast %287 : vector<1x384xf32> to vector<8x384xf32>
    %290 = arith.mulf %288, %289 : vector<8x384xf32>
    %291 = arith.addf %277, %290 : vector<8x384xf32>
    %c1_182 = arith.constant 1 : index
    %c0_183 = arith.constant 0 : index
    %c26_184 = arith.constant 26 : index
    %292 = vector.load %arg1[%c1_182, %c0_183, %c26_184] : memref<2x4x456xf32, #tpu.memory_space<vmem>>, vector<1x1x384xf32>
    %293 = vector.shape_cast %292 : vector<1x1x384xf32> to vector<1x384xf32>
    %294 = vector.broadcast %285 : vector<8x1xf32> to vector<8x384xf32>
    %295 = vector.broadcast %293 : vector<1x384xf32> to vector<8x384xf32>
    %296 = arith.mulf %294, %295 : vector<8x384xf32>
    %297 = arith.addf %283, %296 : vector<8x384xf32>
    %c5_185 = arith.constant 5 : index
    %c0_186 = arith.constant 0 : index
    %c1_187 = arith.constant 1 : index
    %298 = vector.load %arg2[%c5_185, %c0_186, %c1_187] : memref<9x8x4xf32, #tpu.memory_space<vmem>>, vector<1x8x1xf32>
    %299 = vector.shape_cast %298 : vector<1x8x1xf32> to vector<8x1xf32>
    %c0_188 = arith.constant 0 : index
    %c1_189 = arith.constant 1 : index
    %c26_190 = arith.constant 26 : index
    %300 = vector.load %arg1[%c0_188, %c1_189, %c26_190] : memref<2x4x456xf32, #tpu.memory_space<vmem>>, vector<1x1x384xf32>
    %301 = vector.shape_cast %300 : vector<1x1x384xf32> to vector<1x384xf32>
    %302 = vector.broadcast %299 : vector<8x1xf32> to vector<8x384xf32>
    %303 = vector.broadcast %301 : vector<1x384xf32> to vector<8x384xf32>
    %304 = arith.mulf %302, %303 : vector<8x384xf32>
    %305 = arith.addf %291, %304 : vector<8x384xf32>
    %c1_191 = arith.constant 1 : index
    %c1_192 = arith.constant 1 : index
    %c26_193 = arith.constant 26 : index
    %306 = vector.load %arg1[%c1_191, %c1_192, %c26_193] : memref<2x4x456xf32, #tpu.memory_space<vmem>>, vector<1x1x384xf32>
    %307 = vector.shape_cast %306 : vector<1x1x384xf32> to vector<1x384xf32>
    %308 = vector.broadcast %299 : vector<8x1xf32> to vector<8x384xf32>
    %309 = vector.broadcast %307 : vector<1x384xf32> to vector<8x384xf32>
    %310 = arith.mulf %308, %309 : vector<8x384xf32>
    %311 = arith.addf %297, %310 : vector<8x384xf32>
    %c5_194 = arith.constant 5 : index
    %c0_195 = arith.constant 0 : index
    %c2_196 = arith.constant 2 : index
    %312 = vector.load %arg2[%c5_194, %c0_195, %c2_196] : memref<9x8x4xf32, #tpu.memory_space<vmem>>, vector<1x8x1xf32>
    %313 = vector.shape_cast %312 : vector<1x8x1xf32> to vector<8x1xf32>
    %c0_197 = arith.constant 0 : index
    %c2_198 = arith.constant 2 : index
    %c26_199 = arith.constant 26 : index
    %314 = vector.load %arg1[%c0_197, %c2_198, %c26_199] : memref<2x4x456xf32, #tpu.memory_space<vmem>>, vector<1x1x384xf32>
    %315 = vector.shape_cast %314 : vector<1x1x384xf32> to vector<1x384xf32>
    %316 = vector.broadcast %313 : vector<8x1xf32> to vector<8x384xf32>
    %317 = vector.broadcast %315 : vector<1x384xf32> to vector<8x384xf32>
    %318 = arith.mulf %316, %317 : vector<8x384xf32>
    %319 = arith.addf %305, %318 : vector<8x384xf32>
    %c1_200 = arith.constant 1 : index
    %c2_201 = arith.constant 2 : index
    %c26_202 = arith.constant 26 : index
    %320 = vector.load %arg1[%c1_200, %c2_201, %c26_202] : memref<2x4x456xf32, #tpu.memory_space<vmem>>, vector<1x1x384xf32>
    %321 = vector.shape_cast %320 : vector<1x1x384xf32> to vector<1x384xf32>
    %322 = vector.broadcast %313 : vector<8x1xf32> to vector<8x384xf32>
    %323 = vector.broadcast %321 : vector<1x384xf32> to vector<8x384xf32>
    %324 = arith.mulf %322, %323 : vector<8x384xf32>
    %325 = arith.addf %311, %324 : vector<8x384xf32>
    %c5_203 = arith.constant 5 : index
    %c0_204 = arith.constant 0 : index
    %c3_205 = arith.constant 3 : index
    %326 = vector.load %arg2[%c5_203, %c0_204, %c3_205] : memref<9x8x4xf32, #tpu.memory_space<vmem>>, vector<1x8x1xf32>
    %327 = vector.shape_cast %326 : vector<1x8x1xf32> to vector<8x1xf32>
    %c0_206 = arith.constant 0 : index
    %c3_207 = arith.constant 3 : index
    %c26_208 = arith.constant 26 : index
    %328 = vector.load %arg1[%c0_206, %c3_207, %c26_208] : memref<2x4x456xf32, #tpu.memory_space<vmem>>, vector<1x1x384xf32>
    %329 = vector.shape_cast %328 : vector<1x1x384xf32> to vector<1x384xf32>
    %330 = vector.broadcast %327 : vector<8x1xf32> to vector<8x384xf32>
    %331 = vector.broadcast %329 : vector<1x384xf32> to vector<8x384xf32>
    %332 = arith.mulf %330, %331 : vector<8x384xf32>
    %333 = arith.addf %319, %332 : vector<8x384xf32>
    %c1_209 = arith.constant 1 : index
    %c3_210 = arith.constant 3 : index
    %c26_211 = arith.constant 26 : index
    %334 = vector.load %arg1[%c1_209, %c3_210, %c26_211] : memref<2x4x456xf32, #tpu.memory_space<vmem>>, vector<1x1x384xf32>
    %335 = vector.shape_cast %334 : vector<1x1x384xf32> to vector<1x384xf32>
    %336 = vector.broadcast %327 : vector<8x1xf32> to vector<8x384xf32>
    %337 = vector.broadcast %335 : vector<1x384xf32> to vector<8x384xf32>
    %338 = arith.mulf %336, %337 : vector<8x384xf32>
    %339 = arith.addf %325, %338 : vector<8x384xf32>
    %c6 = arith.constant 6 : index
    %c0_212 = arith.constant 0 : index
    %c0_213 = arith.constant 0 : index
    %340 = vector.load %arg2[%c6, %c0_212, %c0_213] : memref<9x8x4xf32, #tpu.memory_space<vmem>>, vector<1x8x1xf32>
    %341 = vector.shape_cast %340 : vector<1x8x1xf32> to vector<8x1xf32>
    %c0_214 = arith.constant 0 : index
    %c0_215 = arith.constant 0 : index
    %c48 = arith.constant 48 : index
    %342 = vector.load %arg1[%c0_214, %c0_215, %c48] : memref<2x4x456xf32, #tpu.memory_space<vmem>>, vector<1x1x384xf32>
    %343 = vector.shape_cast %342 : vector<1x1x384xf32> to vector<1x384xf32>
    %344 = vector.broadcast %341 : vector<8x1xf32> to vector<8x384xf32>
    %345 = vector.broadcast %343 : vector<1x384xf32> to vector<8x384xf32>
    %346 = arith.mulf %344, %345 : vector<8x384xf32>
    %347 = arith.addf %333, %346 : vector<8x384xf32>
    %c1_216 = arith.constant 1 : index
    %c0_217 = arith.constant 0 : index
    %c48_218 = arith.constant 48 : index
    %348 = vector.load %arg1[%c1_216, %c0_217, %c48_218] : memref<2x4x456xf32, #tpu.memory_space<vmem>>, vector<1x1x384xf32>
    %349 = vector.shape_cast %348 : vector<1x1x384xf32> to vector<1x384xf32>
    %350 = vector.broadcast %341 : vector<8x1xf32> to vector<8x384xf32>
    %351 = vector.broadcast %349 : vector<1x384xf32> to vector<8x384xf32>
    %352 = arith.mulf %350, %351 : vector<8x384xf32>
    %353 = arith.addf %339, %352 : vector<8x384xf32>
    %c6_219 = arith.constant 6 : index
    %c0_220 = arith.constant 0 : index
    %c1_221 = arith.constant 1 : index
    %354 = vector.load %arg2[%c6_219, %c0_220, %c1_221] : memref<9x8x4xf32, #tpu.memory_space<vmem>>, vector<1x8x1xf32>
    %355 = vector.shape_cast %354 : vector<1x8x1xf32> to vector<8x1xf32>
    %c0_222 = arith.constant 0 : index
    %c1_223 = arith.constant 1 : index
    %c48_224 = arith.constant 48 : index
    %356 = vector.load %arg1[%c0_222, %c1_223, %c48_224] : memref<2x4x456xf32, #tpu.memory_space<vmem>>, vector<1x1x384xf32>
    %357 = vector.shape_cast %356 : vector<1x1x384xf32> to vector<1x384xf32>
    %358 = vector.broadcast %355 : vector<8x1xf32> to vector<8x384xf32>
    %359 = vector.broadcast %357 : vector<1x384xf32> to vector<8x384xf32>
    %360 = arith.mulf %358, %359 : vector<8x384xf32>
    %361 = arith.addf %347, %360 : vector<8x384xf32>
    %c1_225 = arith.constant 1 : index
    %c1_226 = arith.constant 1 : index
    %c48_227 = arith.constant 48 : index
    %362 = vector.load %arg1[%c1_225, %c1_226, %c48_227] : memref<2x4x456xf32, #tpu.memory_space<vmem>>, vector<1x1x384xf32>
    %363 = vector.shape_cast %362 : vector<1x1x384xf32> to vector<1x384xf32>
    %364 = vector.broadcast %355 : vector<8x1xf32> to vector<8x384xf32>
    %365 = vector.broadcast %363 : vector<1x384xf32> to vector<8x384xf32>
    %366 = arith.mulf %364, %365 : vector<8x384xf32>
    %367 = arith.addf %353, %366 : vector<8x384xf32>
    %c6_228 = arith.constant 6 : index
    %c0_229 = arith.constant 0 : index
    %c2_230 = arith.constant 2 : index
    %368 = vector.load %arg2[%c6_228, %c0_229, %c2_230] : memref<9x8x4xf32, #tpu.memory_space<vmem>>, vector<1x8x1xf32>
    %369 = vector.shape_cast %368 : vector<1x8x1xf32> to vector<8x1xf32>
    %c0_231 = arith.constant 0 : index
    %c2_232 = arith.constant 2 : index
    %c48_233 = arith.constant 48 : index
    %370 = vector.load %arg1[%c0_231, %c2_232, %c48_233] : memref<2x4x456xf32, #tpu.memory_space<vmem>>, vector<1x1x384xf32>
    %371 = vector.shape_cast %370 : vector<1x1x384xf32> to vector<1x384xf32>
    %372 = vector.broadcast %369 : vector<8x1xf32> to vector<8x384xf32>
    %373 = vector.broadcast %371 : vector<1x384xf32> to vector<8x384xf32>
    %374 = arith.mulf %372, %373 : vector<8x384xf32>
    %375 = arith.addf %361, %374 : vector<8x384xf32>
    %c1_234 = arith.constant 1 : index
    %c2_235 = arith.constant 2 : index
    %c48_236 = arith.constant 48 : index
    %376 = vector.load %arg1[%c1_234, %c2_235, %c48_236] : memref<2x4x456xf32, #tpu.memory_space<vmem>>, vector<1x1x384xf32>
    %377 = vector.shape_cast %376 : vector<1x1x384xf32> to vector<1x384xf32>
    %378 = vector.broadcast %369 : vector<8x1xf32> to vector<8x384xf32>
    %379 = vector.broadcast %377 : vector<1x384xf32> to vector<8x384xf32>
    %380 = arith.mulf %378, %379 : vector<8x384xf32>
    %381 = arith.addf %367, %380 : vector<8x384xf32>
    %c6_237 = arith.constant 6 : index
    %c0_238 = arith.constant 0 : index
    %c3_239 = arith.constant 3 : index
    %382 = vector.load %arg2[%c6_237, %c0_238, %c3_239] : memref<9x8x4xf32, #tpu.memory_space<vmem>>, vector<1x8x1xf32>
    %383 = vector.shape_cast %382 : vector<1x8x1xf32> to vector<8x1xf32>
    %c0_240 = arith.constant 0 : index
    %c3_241 = arith.constant 3 : index
    %c48_242 = arith.constant 48 : index
    %384 = vector.load %arg1[%c0_240, %c3_241, %c48_242] : memref<2x4x456xf32, #tpu.memory_space<vmem>>, vector<1x1x384xf32>
    %385 = vector.shape_cast %384 : vector<1x1x384xf32> to vector<1x384xf32>
    %386 = vector.broadcast %383 : vector<8x1xf32> to vector<8x384xf32>
    %387 = vector.broadcast %385 : vector<1x384xf32> to vector<8x384xf32>
    %388 = arith.mulf %386, %387 : vector<8x384xf32>
    %389 = arith.addf %375, %388 : vector<8x384xf32>
    %c1_243 = arith.constant 1 : index
    %c3_244 = arith.constant 3 : index
    %c48_245 = arith.constant 48 : index
    %390 = vector.load %arg1[%c1_243, %c3_244, %c48_245] : memref<2x4x456xf32, #tpu.memory_space<vmem>>, vector<1x1x384xf32>
    %391 = vector.shape_cast %390 : vector<1x1x384xf32> to vector<1x384xf32>
    %392 = vector.broadcast %383 : vector<8x1xf32> to vector<8x384xf32>
    %393 = vector.broadcast %391 : vector<1x384xf32> to vector<8x384xf32>
    %394 = arith.mulf %392, %393 : vector<8x384xf32>
    %395 = arith.addf %381, %394 : vector<8x384xf32>
    %c7 = arith.constant 7 : index
    %c0_246 = arith.constant 0 : index
    %c0_247 = arith.constant 0 : index
    %396 = vector.load %arg2[%c7, %c0_246, %c0_247] : memref<9x8x4xf32, #tpu.memory_space<vmem>>, vector<1x8x1xf32>
    %397 = vector.shape_cast %396 : vector<1x8x1xf32> to vector<8x1xf32>
    %c0_248 = arith.constant 0 : index
    %c0_249 = arith.constant 0 : index
    %c49 = arith.constant 49 : index
    %398 = vector.load %arg1[%c0_248, %c0_249, %c49] : memref<2x4x456xf32, #tpu.memory_space<vmem>>, vector<1x1x384xf32>
    %399 = vector.shape_cast %398 : vector<1x1x384xf32> to vector<1x384xf32>
    %400 = vector.broadcast %397 : vector<8x1xf32> to vector<8x384xf32>
    %401 = vector.broadcast %399 : vector<1x384xf32> to vector<8x384xf32>
    %402 = arith.mulf %400, %401 : vector<8x384xf32>
    %403 = arith.addf %389, %402 : vector<8x384xf32>
    %c1_250 = arith.constant 1 : index
    %c0_251 = arith.constant 0 : index
    %c49_252 = arith.constant 49 : index
    %404 = vector.load %arg1[%c1_250, %c0_251, %c49_252] : memref<2x4x456xf32, #tpu.memory_space<vmem>>, vector<1x1x384xf32>
    %405 = vector.shape_cast %404 : vector<1x1x384xf32> to vector<1x384xf32>
    %406 = vector.broadcast %397 : vector<8x1xf32> to vector<8x384xf32>
    %407 = vector.broadcast %405 : vector<1x384xf32> to vector<8x384xf32>
    %408 = arith.mulf %406, %407 : vector<8x384xf32>
    %409 = arith.addf %395, %408 : vector<8x384xf32>
    %c7_253 = arith.constant 7 : index
    %c0_254 = arith.constant 0 : index
    %c1_255 = arith.constant 1 : index
    %410 = vector.load %arg2[%c7_253, %c0_254, %c1_255] : memref<9x8x4xf32, #tpu.memory_space<vmem>>, vector<1x8x1xf32>
    %411 = vector.shape_cast %410 : vector<1x8x1xf32> to vector<8x1xf32>
    %c0_256 = arith.constant 0 : index
    %c1_257 = arith.constant 1 : index
    %c49_258 = arith.constant 49 : index
    %412 = vector.load %arg1[%c0_256, %c1_257, %c49_258] : memref<2x4x456xf32, #tpu.memory_space<vmem>>, vector<1x1x384xf32>
    %413 = vector.shape_cast %412 : vector<1x1x384xf32> to vector<1x384xf32>
    %414 = vector.broadcast %411 : vector<8x1xf32> to vector<8x384xf32>
    %415 = vector.broadcast %413 : vector<1x384xf32> to vector<8x384xf32>
    %416 = arith.mulf %414, %415 : vector<8x384xf32>
    %417 = arith.addf %403, %416 : vector<8x384xf32>
    %c1_259 = arith.constant 1 : index
    %c1_260 = arith.constant 1 : index
    %c49_261 = arith.constant 49 : index
    %418 = vector.load %arg1[%c1_259, %c1_260, %c49_261] : memref<2x4x456xf32, #tpu.memory_space<vmem>>, vector<1x1x384xf32>
    %419 = vector.shape_cast %418 : vector<1x1x384xf32> to vector<1x384xf32>
    %420 = vector.broadcast %411 : vector<8x1xf32> to vector<8x384xf32>
    %421 = vector.broadcast %419 : vector<1x384xf32> to vector<8x384xf32>
    %422 = arith.mulf %420, %421 : vector<8x384xf32>
    %423 = arith.addf %409, %422 : vector<8x384xf32>
    %c7_262 = arith.constant 7 : index
    %c0_263 = arith.constant 0 : index
    %c2_264 = arith.constant 2 : index
    %424 = vector.load %arg2[%c7_262, %c0_263, %c2_264] : memref<9x8x4xf32, #tpu.memory_space<vmem>>, vector<1x8x1xf32>
    %425 = vector.shape_cast %424 : vector<1x8x1xf32> to vector<8x1xf32>
    %c0_265 = arith.constant 0 : index
    %c2_266 = arith.constant 2 : index
    %c49_267 = arith.constant 49 : index
    %426 = vector.load %arg1[%c0_265, %c2_266, %c49_267] : memref<2x4x456xf32, #tpu.memory_space<vmem>>, vector<1x1x384xf32>
    %427 = vector.shape_cast %426 : vector<1x1x384xf32> to vector<1x384xf32>
    %428 = vector.broadcast %425 : vector<8x1xf32> to vector<8x384xf32>
    %429 = vector.broadcast %427 : vector<1x384xf32> to vector<8x384xf32>
    %430 = arith.mulf %428, %429 : vector<8x384xf32>
    %431 = arith.addf %417, %430 : vector<8x384xf32>
    %c1_268 = arith.constant 1 : index
    %c2_269 = arith.constant 2 : index
    %c49_270 = arith.constant 49 : index
    %432 = vector.load %arg1[%c1_268, %c2_269, %c49_270] : memref<2x4x456xf32, #tpu.memory_space<vmem>>, vector<1x1x384xf32>
    %433 = vector.shape_cast %432 : vector<1x1x384xf32> to vector<1x384xf32>
    %434 = vector.broadcast %425 : vector<8x1xf32> to vector<8x384xf32>
    %435 = vector.broadcast %433 : vector<1x384xf32> to vector<8x384xf32>
    %436 = arith.mulf %434, %435 : vector<8x384xf32>
    %437 = arith.addf %423, %436 : vector<8x384xf32>
    %c7_271 = arith.constant 7 : index
    %c0_272 = arith.constant 0 : index
    %c3_273 = arith.constant 3 : index
    %438 = vector.load %arg2[%c7_271, %c0_272, %c3_273] : memref<9x8x4xf32, #tpu.memory_space<vmem>>, vector<1x8x1xf32>
    %439 = vector.shape_cast %438 : vector<1x8x1xf32> to vector<8x1xf32>
    %c0_274 = arith.constant 0 : index
    %c3_275 = arith.constant 3 : index
    %c49_276 = arith.constant 49 : index
    %440 = vector.load %arg1[%c0_274, %c3_275, %c49_276] : memref<2x4x456xf32, #tpu.memory_space<vmem>>, vector<1x1x384xf32>
    %441 = vector.shape_cast %440 : vector<1x1x384xf32> to vector<1x384xf32>
    %442 = vector.broadcast %439 : vector<8x1xf32> to vector<8x384xf32>
    %443 = vector.broadcast %441 : vector<1x384xf32> to vector<8x384xf32>
    %444 = arith.mulf %442, %443 : vector<8x384xf32>
    %445 = arith.addf %431, %444 : vector<8x384xf32>
    %c1_277 = arith.constant 1 : index
    %c3_278 = arith.constant 3 : index
    %c49_279 = arith.constant 49 : index
    %446 = vector.load %arg1[%c1_277, %c3_278, %c49_279] : memref<2x4x456xf32, #tpu.memory_space<vmem>>, vector<1x1x384xf32>
    %447 = vector.shape_cast %446 : vector<1x1x384xf32> to vector<1x384xf32>
    %448 = vector.broadcast %439 : vector<8x1xf32> to vector<8x384xf32>
    %449 = vector.broadcast %447 : vector<1x384xf32> to vector<8x384xf32>
    %450 = arith.mulf %448, %449 : vector<8x384xf32>
    %451 = arith.addf %437, %450 : vector<8x384xf32>
    %c8 = arith.constant 8 : index
    %c0_280 = arith.constant 0 : index
    %c0_281 = arith.constant 0 : index
    %452 = vector.load %arg2[%c8, %c0_280, %c0_281] : memref<9x8x4xf32, #tpu.memory_space<vmem>>, vector<1x8x1xf32>
    %453 = vector.shape_cast %452 : vector<1x8x1xf32> to vector<8x1xf32>
    %c0_282 = arith.constant 0 : index
    %c0_283 = arith.constant 0 : index
    %c50 = arith.constant 50 : index
    %454 = vector.load %arg1[%c0_282, %c0_283, %c50] : memref<2x4x456xf32, #tpu.memory_space<vmem>>, vector<1x1x384xf32>
    %455 = vector.shape_cast %454 : vector<1x1x384xf32> to vector<1x384xf32>
    %456 = vector.broadcast %453 : vector<8x1xf32> to vector<8x384xf32>
    %457 = vector.broadcast %455 : vector<1x384xf32> to vector<8x384xf32>
    %458 = arith.mulf %456, %457 : vector<8x384xf32>
    %459 = arith.addf %445, %458 : vector<8x384xf32>
    %c1_284 = arith.constant 1 : index
    %c0_285 = arith.constant 0 : index
    %c50_286 = arith.constant 50 : index
    %460 = vector.load %arg1[%c1_284, %c0_285, %c50_286] : memref<2x4x456xf32, #tpu.memory_space<vmem>>, vector<1x1x384xf32>
    %461 = vector.shape_cast %460 : vector<1x1x384xf32> to vector<1x384xf32>
    %462 = vector.broadcast %453 : vector<8x1xf32> to vector<8x384xf32>
    %463 = vector.broadcast %461 : vector<1x384xf32> to vector<8x384xf32>
    %464 = arith.mulf %462, %463 : vector<8x384xf32>
    %465 = arith.addf %451, %464 : vector<8x384xf32>
    %c8_287 = arith.constant 8 : index
    %c0_288 = arith.constant 0 : index
    %c1_289 = arith.constant 1 : index
    %466 = vector.load %arg2[%c8_287, %c0_288, %c1_289] : memref<9x8x4xf32, #tpu.memory_space<vmem>>, vector<1x8x1xf32>
    %467 = vector.shape_cast %466 : vector<1x8x1xf32> to vector<8x1xf32>
    %c0_290 = arith.constant 0 : index
    %c1_291 = arith.constant 1 : index
    %c50_292 = arith.constant 50 : index
    %468 = vector.load %arg1[%c0_290, %c1_291, %c50_292] : memref<2x4x456xf32, #tpu.memory_space<vmem>>, vector<1x1x384xf32>
    %469 = vector.shape_cast %468 : vector<1x1x384xf32> to vector<1x384xf32>
    %470 = vector.broadcast %467 : vector<8x1xf32> to vector<8x384xf32>
    %471 = vector.broadcast %469 : vector<1x384xf32> to vector<8x384xf32>
    %472 = arith.mulf %470, %471 : vector<8x384xf32>
    %473 = arith.addf %459, %472 : vector<8x384xf32>
    %c1_293 = arith.constant 1 : index
    %c1_294 = arith.constant 1 : index
    %c50_295 = arith.constant 50 : index
    %474 = vector.load %arg1[%c1_293, %c1_294, %c50_295] : memref<2x4x456xf32, #tpu.memory_space<vmem>>, vector<1x1x384xf32>
    %475 = vector.shape_cast %474 : vector<1x1x384xf32> to vector<1x384xf32>
    %476 = vector.broadcast %467 : vector<8x1xf32> to vector<8x384xf32>
    %477 = vector.broadcast %475 : vector<1x384xf32> to vector<8x384xf32>
    %478 = arith.mulf %476, %477 : vector<8x384xf32>
    %479 = arith.addf %465, %478 : vector<8x384xf32>
    %c8_296 = arith.constant 8 : index
    %c0_297 = arith.constant 0 : index
    %c2_298 = arith.constant 2 : index
    %480 = vector.load %arg2[%c8_296, %c0_297, %c2_298] : memref<9x8x4xf32, #tpu.memory_space<vmem>>, vector<1x8x1xf32>
    %481 = vector.shape_cast %480 : vector<1x8x1xf32> to vector<8x1xf32>
    %c0_299 = arith.constant 0 : index
    %c2_300 = arith.constant 2 : index
    %c50_301 = arith.constant 50 : index
    %482 = vector.load %arg1[%c0_299, %c2_300, %c50_301] : memref<2x4x456xf32, #tpu.memory_space<vmem>>, vector<1x1x384xf32>
    %483 = vector.shape_cast %482 : vector<1x1x384xf32> to vector<1x384xf32>
    %484 = vector.broadcast %481 : vector<8x1xf32> to vector<8x384xf32>
    %485 = vector.broadcast %483 : vector<1x384xf32> to vector<8x384xf32>
    %486 = arith.mulf %484, %485 : vector<8x384xf32>
    %487 = arith.addf %473, %486 : vector<8x384xf32>
    %c1_302 = arith.constant 1 : index
    %c2_303 = arith.constant 2 : index
    %c50_304 = arith.constant 50 : index
    %488 = vector.load %arg1[%c1_302, %c2_303, %c50_304] : memref<2x4x456xf32, #tpu.memory_space<vmem>>, vector<1x1x384xf32>
    %489 = vector.shape_cast %488 : vector<1x1x384xf32> to vector<1x384xf32>
    %490 = vector.broadcast %481 : vector<8x1xf32> to vector<8x384xf32>
    %491 = vector.broadcast %489 : vector<1x384xf32> to vector<8x384xf32>
    %492 = arith.mulf %490, %491 : vector<8x384xf32>
    %493 = arith.addf %479, %492 : vector<8x384xf32>
    %c8_305 = arith.constant 8 : index
    %c0_306 = arith.constant 0 : index
    %c3_307 = arith.constant 3 : index
    %494 = vector.load %arg2[%c8_305, %c0_306, %c3_307] : memref<9x8x4xf32, #tpu.memory_space<vmem>>, vector<1x8x1xf32>
    %495 = vector.shape_cast %494 : vector<1x8x1xf32> to vector<8x1xf32>
    %c0_308 = arith.constant 0 : index
    %c3_309 = arith.constant 3 : index
    %c50_310 = arith.constant 50 : index
    %496 = vector.load %arg1[%c0_308, %c3_309, %c50_310] : memref<2x4x456xf32, #tpu.memory_space<vmem>>, vector<1x1x384xf32>
    %497 = vector.shape_cast %496 : vector<1x1x384xf32> to vector<1x384xf32>
    %498 = vector.broadcast %495 : vector<8x1xf32> to vector<8x384xf32>
    %499 = vector.broadcast %497 : vector<1x384xf32> to vector<8x384xf32>
    %500 = arith.mulf %498, %499 : vector<8x384xf32>
    %501 = arith.addf %487, %500 : vector<8x384xf32>
    %c1_311 = arith.constant 1 : index
    %c3_312 = arith.constant 3 : index
    %c50_313 = arith.constant 50 : index
    %502 = vector.load %arg1[%c1_311, %c3_312, %c50_313] : memref<2x4x456xf32, #tpu.memory_space<vmem>>, vector<1x1x384xf32>
    %503 = vector.shape_cast %502 : vector<1x1x384xf32> to vector<1x384xf32>
    %504 = vector.broadcast %495 : vector<8x1xf32> to vector<8x384xf32>
    %505 = vector.broadcast %503 : vector<1x384xf32> to vector<8x384xf32>
    %506 = arith.mulf %504, %505 : vector<8x384xf32>
    %507 = arith.addf %493, %506 : vector<8x384xf32>
    %508 = vector.broadcast %0 : vector<8x1xf32> to vector<8x384xf32>
    %509 = arith.mulf %501, %508 : vector<8x384xf32>
    %510 = vector.broadcast %1 : vector<8x1xf32> to vector<8x384xf32>
    %511 = arith.addf %509, %510 : vector<8x384xf32>
    %cst_314 = arith.constant 0.000000e+00 : f32
    %512 = vector.broadcast %cst_314 : f32 to vector<8x384xf32>
    %513 = arith.maximumf %511, %512 : vector<8x384xf32>
    %c0_315 = arith.constant 0 : index
    %c0_316 = arith.constant 0 : index
    %c0_317 = arith.constant 0 : index
    %514 = vector.load %arg5[%c0_315, %c0_316, %c0_317] : memref<2x8x384xf32, #tpu.memory_space<vmem>>, vector<1x8x384xf32>
    %515 = vector.shape_cast %514 : vector<1x8x384xf32> to vector<8x384xf32>
    %516 = vector.shape_cast %513 : vector<8x384xf32> to vector<1x8x384xf32>
    tpu.vector_store %arg5[%c0_315, %c0_316, %c0_317], %516 {strides = array<i32>} : memref<2x8x384xf32, #tpu.memory_space<vmem>>, vector<1x8x384xf32>,
    %517 = vector.broadcast %0 : vector<8x1xf32> to vector<8x384xf32>
    %518 = arith.mulf %507, %517 : vector<8x384xf32>
    %519 = vector.broadcast %1 : vector<8x1xf32> to vector<8x384xf32>
    %520 = arith.addf %518, %519 : vector<8x384xf32>
    %cst_318 = arith.constant 0.000000e+00 : f32
    %521 = vector.broadcast %cst_318 : f32 to vector<8x384xf32>
    %522 = arith.maximumf %520, %521 : vector<8x384xf32>
    %c1_319 = arith.constant 1 : index
    %c0_320 = arith.constant 0 : index
    %c0_321 = arith.constant 0 : index
    %523 = vector.load %arg5[%c1_319, %c0_320, %c0_321] : memref<2x8x384xf32, #tpu.memory_space<vmem>>, vector<1x8x384xf32>
    %524 = vector.shape_cast %523 : vector<1x8x384xf32> to vector<8x384xf32>
    %525 = vector.shape_cast %522 : vector<8x384xf32> to vector<1x8x384xf32>
    tpu.vector_store %arg5[%c1_319, %c0_320, %c0_321], %525 {strides = array<i32>} : memref<2x8x384xf32, #tpu.memory_space<vmem>>, vector<1x8x384xf32>,
    return
  }
  func.func @transform_0(%arg0: i32) -> (i32, i32, i32) {
    %c0_i32 = arith.constant 0 : i32
    %c0_i32_0 = arith.constant 0 : i32
    %c0_i32_1 = arith.constant 0 : i32
    %c0_i32_2 = arith.constant 0 : i32
    return %c0_i32, %c0_i32_0, %c0_i32_1 : i32, i32, i32
  }
  func.func @transform_1(%arg0: i32) -> (i32, i32, i32) {
    %c0_i32 = arith.constant 0 : i32
    %c0_i32_0 = arith.constant 0 : i32
    %c0_i32_1 = arith.constant 0 : i32
    %c0_i32_2 = arith.constant 0 : i32
    return %c0_i32, %c0_i32_0, %c0_i32_1 : i32, i32, i32
  }
  func.func @transform_2(%arg0: i32) -> (i32, i32) {
    %c0_i32 = arith.constant 0 : i32
    %c0_i32_0 = arith.constant 0 : i32
    %c0_i32_1 = arith.constant 0 : i32
    return %c0_i32, %c0_i32_0 : i32, i32
  }
  func.func @transform_3(%arg0: i32) -> (i32, i32) {
    %c0_i32 = arith.constant 0 : i32
    %c0_i32_0 = arith.constant 0 : i32
    %c0_i32_1 = arith.constant 0 : i32
    return %c0_i32, %c0_i32_0 : i32, i32
  }
  func.func @transform_4(%arg0: i32) -> (i32, i32, i32) {
    %c0_i32 = arith.constant 0 : i32
    %c0_i32_0 = arith.constant 0 : i32
    %c0_i32_1 = arith.constant 0 : i32
    %c0_i32_2 = arith.constant 0 : i32
    return %c0_i32, %c0_i32_0, %c0_i32_1 : i32, i32, i32
  }
}

</mosaic_0001>

<llo_original>
// kernel: conlevel_pallas.1
$region0: #{conlevel_pallas.1}
  #allocation0 [shape = 'u32[]', space=smem, size = 0x4, offset = 0x4, fixed_abs, tag = 'smem constant byte address 0x4 - core index']
  #allocation1 [shape = 'u32[144,128]{1,0:T(1,128)}', space=vmem, size = 0x12000, scoped, tag = 'internal scratch']
  %s0 = inlined_call_operand.vmem [shape: f32[2,4,456], index: 0, kind: input, shape index: {}]
  %s1 = inlined_call_operand.vmem [shape: f32[9,8,4], index: 1, kind: input, shape index: {}]
  %s2 = inlined_call_operand.vmem [shape: f32[8,1], index: 2, kind: input, shape index: {}]
  %s3 = inlined_call_operand.vmem [shape: f32[8,1], index: 3, kind: input, shape index: {}]
  %s4 = inlined_call_operand.vmem [shape: f32[2,8,384], index: 4, kind: output, shape index: {}]
  %s5 = sld [smem:[#allocation0]]
  $region26: #{conlevel_pallas.1} parent=0
    _
  %s7 = ssub.s32 1, %s5
  %s8 = scalar_select 0, %s7, %s5
  // Predicated region
  $region2: #{conlevel_pallas.1} parent=0 // pred_check
    _
  $region3: #{conlevel_pallas.1} parent=0 // pred_check_branch
    %10 = sbr.rel (0) target = $region5
  $region4: #{conlevel_pallas.1} parent=0 // pred_region
    _
  $region5: #{conlevel_pallas.1} parent=0 // pred_fallthru
    _
  // Predicated region
  $region6: #{conlevel_pallas.1} parent=0 // pred_check
    _
  $region7: #{conlevel_pallas.1} parent=0 // pred_check_branch
    %12 = sbr.rel (0) target = $region9
  $region8: #{conlevel_pallas.1} parent=0 // pred_region
    _
  $region9: #{conlevel_pallas.1} parent=0 // pred_fallthru
    _
  // Predicated region
  $region10: #{conlevel_pallas.1} parent=0 // pred_check
    _
  $region11: #{conlevel_pallas.1} parent=0 // pred_check_branch
    %14 = sbr.rel (0) target = $region13
  $region12: #{conlevel_pallas.1} parent=0 // pred_region
    _
  $region13: #{conlevel_pallas.1} parent=0 // pred_fallthru
    _
  // Predicated region
  $region14: #{conlevel_pallas.1} parent=0 // pred_check
    _
  $region15: #{conlevel_pallas.1} parent=0 // pred_check_branch
    %16 = sbr.rel (0) target = $region17
  $region16: #{conlevel_pallas.1} parent=0 // pred_region
    _
  $region17: #{conlevel_pallas.1} parent=0 // pred_fallthru
    _
  %v17 = vld [vmem:[%s2] sm:$0xff]
  %v18 = vld [vmem:[%s3] sm:$0xff]
  %v19 = vld [vmem:[%s1] sm:$0xff]
  %v20 = vld [vmem:[%s0] ss:$4 sm:$0x7]
  %22 = vset.pattern.permute.xlu0 0
  %23 = vperm.xlu0 %22, %v19
  %v24 = vpop.permute.xlu0 %23
  %v27 = vlaneseq
  %v28 = vshrl.u32 %v27, 7
  %v29 = vsub.s32 0, %v28
  %v30 = vrot.slane %v20, %v29
  %v31 = vlaneseq
  %v32 = vshrl.u32 %v31, 7
  %v33 = vsub.s32 1, %v32
  %v34 = vrot.slane %v20, %v33
  %v35 = vlaneseq
  %v36 = vshrl.u32 %v35, 7
  %v37 = vsub.s32 2, %v36
  %v38 = vrot.slane %v20, %v37
  %v42 = vmul.f32 %v24, %v30
  %v43 = vmul.f32 %v24, %v34
  %v44 = vmul.f32 %v24, %v38
  %v45 = vadd.f32 %v42, 0.0
  %v46 = vadd.f32 %v43, 0.0
  %v47 = vadd.f32 %v44, 0.0
  %s48 = scalar_lea.vmem %s0, 16
  %v49 = vld [vmem:[%s48] ss:$4 sm:$0x7]
  %v51 = vlaneseq
  %v52 = vshrl.u32 %v51, 7
  %v53 = vsub.s32 0, %v52
  %v54 = vrot.slane %v49, %v53
  %v55 = vlaneseq
  %v56 = vshrl.u32 %v55, 7
  %v57 = vsub.s32 1, %v56
  %v58 = vrot.slane %v49, %v57
  %v59 = vlaneseq
  %v60 = vshrl.u32 %v59, 7
  %v61 = vsub.s32 2, %v60
  %v62 = vrot.slane %v49, %v61
  %v66 = vmul.f32 %v24, %v54
  %v67 = vmul.f32 %v24, %v58
  %v68 = vmul.f32 %v24, %v62
  %v69 = vadd.f32 %v66, 0.0
  %v70 = vadd.f32 %v67, 0.0
  %v71 = vadd.f32 %v68, 0.0
  %s72 = scalar_lea.vmem %s0, 1
  %v73 = vld [vmem:[%s72] ss:$4 sm:$0x7]
  %74 = vset.pattern.permute.xlu0 1
  %75 = vperm.xlu0 %74, %v19
  %v76 = vpop.permute.xlu0 %75
  %v79 = vlaneseq
  %v80 = vshrl.u32 %v79, 7
  %v81 = vsub.s32 0, %v80
  %v82 = vrot.slane %v73, %v81
  %v83 = vlaneseq
  %v84 = vshrl.u32 %v83, 7
  %v85 = vsub.s32 1, %v84
  %v86 = vrot.slane %v73, %v85
  %v87 = vlaneseq
  %v88 = vshrl.u32 %v87, 7
  %v89 = vsub.s32 2, %v88
  %v90 = vrot.slane %v73, %v89
  %v94 = vmul.f32 %v76, %v82
  %v95 = vmul.f32 %v76, %v86
  %v96 = vmul.f32 %v76, %v90
  %v97 = vadd.f32 %v45, %v94
  %v98 = vadd.f32 %v46, %v95
  %v99 = vadd.f32 %v47, %v96
  %s100 = scalar_lea.vmem %s48, 1
  %v101 = vld [vmem:[%s100] ss:$4 sm:$0x7]
  %v103 = vlaneseq
  %v104 = vshrl.u32 %v103, 7
  %v105 = vsub.s32 0, %v104
  %v106 = vrot.slane %v101, %v105
  %v107 = vlaneseq
  %v108 = vshrl.u32 %v107, 7
  %v109 = vsub.s32 1, %v108
  %v110 = vrot.slane %v101, %v109
  %v111 = vlaneseq
  %v112 = vshrl.u32 %v111, 7
  %v113 = vsub.s32 2, %v112
  %v114 = vrot.slane %v101, %v113
  %v118 = vmul.f32 %v76, %v106
  %v119 = vmul.f32 %v76, %v110
  %v120 = vmul.f32 %v76, %v114
  %v121 = vadd.f32 %v69, %v118
  %v122 = vadd.f32 %v70, %v119
  %v123 = vadd.f32 %v71, %v120
  %s124 = scalar_lea.vmem %s0, 2
  %v125 = vld [vmem:[%s124] ss:$4 sm:$0x7]
  %126 = vset.pattern.permute.xlu0 2
  %127 = vperm.xlu0 %126, %v19
  %v128 = vpop.permute.xlu0 %127
  %v131 = vlaneseq
  %v132 = vshrl.u32 %v131, 7
  %v133 = vsub.s32 0, %v132
  %v134 = vrot.slane %v125, %v133
  %v135 = vlaneseq
  %v136 = vshrl.u32 %v135, 7
  %v137 = vsub.s32 1, %v136
  %v138 = vrot.slane %v125, %v137
  %v139 = vlaneseq
  %v140 = vshrl.u32 %v139, 7
  %v141 = vsub.s32 2, %v140
  %v142 = vrot.slane %v125, %v141
  %v146 = vmul.f32 %v128, %v134
  %v147 = vmul.f32 %v128, %v138
  %v148 = vmul.f32 %v128, %v142
  %v149 = vadd.f32 %v97, %v146
  %v150 = vadd.f32 %v98, %v147
  %v151 = vadd.f32 %v99, %v148
  %s152 = scalar_lea.vmem %s48, 2
  %v153 = vld [vmem:[%s152] ss:$4 sm:$0x7]
  %v155 = vlaneseq
  %v156 = vshrl.u32 %v155, 7
  %v157 = vsub.s32 0, %v156
  %v158 = vrot.slane %v153, %v157
  %v159 = vlaneseq
  %v160 = vshrl.u32 %v159, 7
  %v161 = vsub.s32 1, %v160
  %v162 = vrot.slane %v153, %v161
  %v163 = vlaneseq
  %v164 = vshrl.u32 %v163, 7
  %v165 = vsub.s32 2, %v164
  %v166 = vrot.slane %v153, %v165
  %v170 = vmul.f32 %v128, %v158
  %v171 = vmul.f32 %v128, %v162
  %v172 = vmul.f32 %v128, %v166
  %v173 = vadd.f32 %v121, %v170
  %v174 = vadd.f32 %v122, %v171
  %v175 = vadd.f32 %v123, %v172
  %s176 = scalar_lea.vmem %s0, 3
  %v177 = vld [vmem:[%s176] ss:$4 sm:$0x7]
  %178 = vset.pattern.permute.xlu0 3
  %179 = vperm.xlu0 %178, %v19
  %v180 = vpop.permute.xlu0 %179
  %v183 = vlaneseq
  %v184 = vshrl.u32 %v183, 7
  %v185 = vsub.s32 0, %v184
  %v186 = vrot.slane %v177, %v185
  %v187 = vlaneseq
  %v188 = vshrl.u32 %v187, 7
  %v189 = vsub.s32 1, %v188
  %v190 = vrot.slane %v177, %v189
  %v191 = vlaneseq
  %v192 = vshrl.u32 %v191, 7
  %v193 = vsub.s32 2, %v192
  %v194 = vrot.slane %v177, %v193
  %v198 = vmul.f32 %v180, %v186
  %v199 = vmul.f32 %v180, %v190
  %v200 = vmul.f32 %v180, %v194
  %v201 = vadd.f32 %v149, %v198
  %v202 = vadd.f32 %v150, %v199
  %v203 = vadd.f32 %v151, %v200
  %s204 = scalar_lea.vmem %s48, 3
  %v205 = vld [vmem:[%s204] ss:$4 sm:$0x7]
  %v207 = vlaneseq
  %v208 = vshrl.u32 %v207, 7
  %v209 = vsub.s32 0, %v208
  %v210 = vrot.slane %v205, %v209
  %v211 = vlaneseq
  %v212 = vshrl.u32 %v211, 7
  %v213 = vsub.s32 1, %v212
  %v214 = vrot.slane %v205, %v213
  %v215 = vlaneseq
  %v216 = vshrl.u32 %v215, 7
  %v217 = vsub.s32 2, %v216
  %v218 = vrot.slane %v205, %v217
  %v222 = vmul.f32 %v180, %v210
  %v223 = vmul.f32 %v180, %v214
  %v224 = vmul.f32 %v180, %v218
  %v225 = vadd.f32 %v173, %v222
  %v226 = vadd.f32 %v174, %v223
  %v227 = vadd.f32 %v175, %v224
  %s228 = scalar_lea.vmem %s1, 8
  %v229 = vld [vmem:[%s228] sm:$0xff]
  %v230 = vld [vmem:[%s0] ss:$4 sm:$0xf]
  %232 = vset.pattern.permute.xlu0 0
  %233 = vperm.xlu0 %232, %v229
  %v234 = vpop.permute.xlu0 %233
  %v237 = vlaneseq
  %v238 = vshrl.u32 %v237, 7
  %v239 = vsub.s32 0, %v238
  %v240 = vrot.slane %v230, %v239
  %v241 = vlaneseq
  %v242 = vshrl.u32 %v241, 7
  %v243 = vsub.s32 1, %v242
  %v244 = vrot.slane %v230, %v243
  %v245 = vlaneseq
  %v246 = vshrl.u32 %v245, 7
  %v247 = vsub.s32 2, %v246
  %v248 = vrot.slane %v230, %v247
  %v249 = vlaneseq
  %v250 = vshrl.u32 %v249, 7
  %v251 = vsub.s32 3, %v250
  %v252 = vrot.slane %v230, %v251
  %v257 = vmul.f32 %v234, %v240
  %v258 = vmul.f32 %v234, %v244
  %v259 = vmul.f32 %v234, %v248
  %v260 = vmul.f32 %v234, %v252
  %265 = vrot.lane.b32.xlu0 %v257, 127
  %v266 = vpop.permute.xlu0 %265
  %267 = vrot.lane.b32.xlu0 %v258, 127
  %v268 = vpop.permute.xlu0 %267
  %269 = vrot.lane.b32.xlu0 %v259, 127
  %v270 = vpop.permute.xlu0 %269
  %271 = vrot.lane.b32.xlu0 %v260, 127
  %v272 = vpop.permute.xlu0 %271
  %vm273 = vcmask 1039360
  %v274 = vsel %vm273, %v266, %v268
  %v275 = vsel %vm273, %v268, %v270
  %v276 = vsel %vm273, %v270, %v272
  %v280 = vadd.f32 %v201, %v274
  %v281 = vadd.f32 %v202, %v275
  %v282 = vadd.f32 %v203, %v276
  %v283 = vld [vmem:[%s48] ss:$4 sm:$0xf]
  %v285 = vlaneseq
  %v286 = vshrl.u32 %v285, 7
  %v287 = vsub.s32 0, %v286
  %v288 = vrot.slane %v283, %v287
  %v289 = vlaneseq
  %v290 = vshrl.u32 %v289, 7
  %v291 = vsub.s32 1, %v290
  %v292 = vrot.slane %v283, %v291
  %v293 = vlaneseq
  %v294 = vshrl.u32 %v293, 7
  %v295 = vsub.s32 2, %v294
  %v296 = vrot.slane %v283, %v295
  %v297 = vlaneseq
  %v298 = vshrl.u32 %v297, 7
  %v299 = vsub.s32 3, %v298
  %v300 = vrot.slane %v283, %v299
  %v305 = vmul.f32 %v234, %v288
  %v306 = vmul.f32 %v234, %v292
  %v307 = vmul.f32 %v234, %v296
  %v308 = vmul.f32 %v234, %v300
  %313 = vrot.lane.b32.xlu0 %v305, 127
  %v314 = vpop.permute.xlu0 %313
  %315 = vrot.lane.b32.xlu0 %v306, 127
  %v316 = vpop.permute.xlu0 %315
  %317 = vrot.lane.b32.xlu0 %v307, 127
  %v318 = vpop.permute.xlu0 %317
  %319 = vrot.lane.b32.xlu0 %v308, 127
  %v320 = vpop.permute.xlu0 %319
  %v321 = vsel %vm273, %v314, %v316
  %v322 = vsel %vm273, %v316, %v318
  %v323 = vsel %vm273, %v318, %v320
  %v327 = vadd.f32 %v225, %v321
  %v328 = vadd.f32 %v226, %v322
  %v329 = vadd.f32 %v227, %v323
  %v330 = vld [vmem:[%s72] ss:$4 sm:$0xf]
  %331 = vset.pattern.permute.xlu0 1
  %332 = vperm.xlu0 %331, %v229
  %v333 = vpop.permute.xlu0 %332
  %v336 = vlaneseq
  %v337 = vshrl.u32 %v336, 7
  %v338 = vsub.s32 0, %v337
  %v339 = vrot.slane %v330, %v338
  %v340 = vlaneseq
  %v341 = vshrl.u32 %v340, 7
  %v342 = vsub.s32 1, %v341
  %v343 = vrot.slane %v330, %v342
  %v344 = vlaneseq
  %v345 = vshrl.u32 %v344, 7
  %v346 = vsub.s32 2, %v345
  %v347 = vrot.slane %v330, %v346
  %v348 = vlaneseq
  %v349 = vshrl.u32 %v348, 7
  %v350 = vsub.s32 3, %v349
  %v351 = vrot.slane %v330, %v350
  %v356 = vmul.f32 %v333, %v339
  %v357 = vmul.f32 %v333, %v343
  %v358 = vmul.f32 %v333, %v347
  %v359 = vmul.f32 %v333, %v351
  %364 = vrot.lane.b32.xlu0 %v356, 127
  %v365 = vpop.permute.xlu0 %364
  %366 = vrot.lane.b32.xlu0 %v357, 127
  %v367 = vpop.permute.xlu0 %366
  %368 = vrot.lane.b32.xlu0 %v358, 127
  %v369 = vpop.permute.xlu0 %368
  %370 = vrot.lane.b32.xlu0 %v359, 127
  %v371 = vpop.permute.xlu0 %370
  %v372 = vsel %vm273, %v365, %v367
  %v373 = vsel %vm273, %v367, %v369
  %v374 = vsel %vm273, %v369, %v371
  %v378 = vadd.f32 %v280, %v372
  %v379 = vadd.f32 %v281, %v373
  %v380 = vadd.f32 %v282, %v374
  %v381 = vld [vmem:[%s100] ss:$4 sm:$0xf]
  %v383 = vlaneseq
  %v384 = vshrl.u32 %v383, 7
  %v385 = vsub.s32 0, %v384
  %v386 = vrot.slane %v381, %v385
  %v387 = vlaneseq
  %v388 = vshrl.u32 %v387, 7
  %v389 = vsub.s32 1, %v388
  %v390 = vrot.slane %v381, %v389
  %v391 = vlaneseq
  %v392 = vshrl.u32 %v391, 7
  %v393 = vsub.s32 2, %v392
  %v394 = vrot.slane %v381, %v393
  %v395 = vlaneseq
  %v396 = vshrl.u32 %v395, 7
  %v397 = vsub.s32 3, %v396
  %v398 = vrot.slane %v381, %v397
  %v403 = vmul.f32 %v333, %v386
  %v404 = vmul.f32 %v333, %v390
  %v405 = vmul.f32 %v333, %v394
  %v406 = vmul.f32 %v333, %v398
  %411 = vrot.lane.b32.xlu0 %v403, 127
  %v412 = vpop.permute.xlu0 %411
  %413 = vrot.lane.b32.xlu0 %v404, 127
  %v414 = vpop.permute.xlu0 %413
  %415 = vrot.lane.b32.xlu0 %v405, 127
  %v416 = vpop.permute.xlu0 %415
  %417 = vrot.lane.b32.xlu0 %v406, 127
  %v418 = vpop.permute.xlu0 %417
  %v419 = vsel %vm273, %v412, %v414
  %v420 = vsel %vm273, %v414, %v416
  %v421 = vsel %vm273, %v416, %v418
  %v425 = vadd.f32 %v327, %v419
  %v426 = vadd.f32 %v328, %v420
  %v427 = vadd.f32 %v329, %v421
  %v428 = vld [vmem:[%s124] ss:$4 sm:$0xf]
  %429 = vset.pattern.permute.xlu0 2
  %430 = vperm.xlu0 %429, %v229
  %v431 = vpop.permute.xlu0 %430
  %v434 = vlaneseq
  %v435 = vshrl.u32 %v434, 7
  %v436 = vsub.s32 0, %v435
  %v437 = vrot.slane %v428, %v436
  %v438 = vlaneseq
  %v439 = vshrl.u32 %v438, 7
  %v440 = vsub.s32 1, %v439
  %v441 = vrot.slane %v428, %v440
  %v442 = vlaneseq
  %v443 = vshrl.u32 %v442, 7
  %v444 = vsub.s32 2, %v443
  %v445 = vrot.slane %v428, %v444
  %v446 = vlaneseq
  %v447 = vshrl.u32 %v446, 7
  %v448 = vsub.s32 3, %v447
  %v449 = vrot.slane %v428, %v448
  %v454 = vmul.f32 %v431, %v437
  %v455 = vmul.f32 %v431, %v441
  %v456 = vmul.f32 %v431, %v445
  %v457 = vmul.f32 %v431, %v449
  %462 = vrot.lane.b32.xlu0 %v454, 127
  %v463 = vpop.permute.xlu0 %462
  %464 = vrot.lane.b32.xlu0 %v455, 127
  %v465 = vpop.permute.xlu0 %464
  %466 = vrot.lane.b32.xlu0 %v456, 127
  %v467 = vpop.permute.xlu0 %466
  %468 = vrot.lane.b32.xlu0 %v457, 127
  %v469 = vpop.permute.xlu0 %468
  %v470 = vsel %vm273, %v463, %v465
  %v471 = vsel %vm273, %v465, %v467
  %v472 = vsel %vm273, %v467, %v469
  %v476 = vadd.f32 %v378, %v470
  %v477 = vadd.f32 %v379, %v471
  %v478 = vadd.f32 %v380, %v472
  %v479 = vld [vmem:[%s152] ss:$4 sm:$0xf]
  %v481 = vlaneseq
  %v482 = vshrl.u32 %v481, 7
  %v483 = vsub.s32 0, %v482
  %v484 = vrot.slane %v479, %v483
  %v485 = vlaneseq
  %v486 = vshrl.u32 %v485, 7
  %v487 = vsub.s32 1, %v486
  %v488 = vrot.slane %v479, %v487
  %v489 = vlaneseq
  %v490 = vshrl.u32 %v489, 7
  %v491 = vsub.s32 2, %v490
  %v492 = vrot.slane %v479, %v491
  %v493 = vlaneseq
  %v494 = vshrl.u32 %v493, 7
  %v495 = vsub.s32 3, %v494
  %v496 = vrot.slane %v479, %v495
  %v501 = vmul.f32 %v431, %v484
  %v502 = vmul.f32 %v431, %v488
  %v503 = vmul.f32 %v431, %v492
  %v504 = vmul.f32 %v431, %v496
  %509 = vrot.lane.b32.xlu0 %v501, 127
  %v510 = vpop.permute.xlu0 %509
  %511 = vrot.lane.b32.xlu0 %v502, 127
  %v512 = vpop.permute.xlu0 %511
  %513 = vrot.lane.b32.xlu0 %v503, 127
  %v514 = vpop.permute.xlu0 %513
  %515 = vrot.lane.b32.xlu0 %v504, 127
  %v516 = vpop.permute.xlu0 %515
  %v517 = vsel %vm273, %v510, %v512
  %v518 = vsel %vm273, %v512, %v514
  %v519 = vsel %vm273, %v514, %v516
  %v523 = vadd.f32 %v425, %v517
  %v524 = vadd.f32 %v426, %v518
  %v525 = vadd.f32 %v427, %v519
  %v526 = vld [vmem:[%s176] ss:$4 sm:$0xf]
  %527 = vset.pattern.permute.xlu0 3
  %528 = vperm.xlu0 %527, %v229
  %v529 = vpop.permute.xlu0 %528
  %v532 = vlaneseq
  %v533 = vshrl.u32 %v532, 7
  %v534 = vsub.s32 0, %v533
  %v535 = vrot.slane %v526, %v534
  %v536 = vlaneseq
  %v537 = vshrl.u32 %v536, 7
  %v538 = vsub.s32 1, %v537
  %v539 = vrot.slane %v526, %v538
  %v540 = vlaneseq
  %v541 = vshrl.u32 %v540, 7
  %v542 = vsub.s32 2, %v541
  %v543 = vrot.slane %v526, %v542
  %v544 = vlaneseq
  %v545 = vshrl.u32 %v544, 7
  %v546 = vsub.s32 3, %v545
  %v547 = vrot.slane %v526, %v546
  %v552 = vmul.f32 %v529, %v535
  %v553 = vmul.f32 %v529, %v539
  %v554 = vmul.f32 %v529, %v543
  %v555 = vmul.f32 %v529, %v547
  %560 = vrot.lane.b32.xlu0 %v552, 127
  %v561 = vpop.permute.xlu0 %560
  %562 = vrot.lane.b32.xlu0 %v553, 127
  %v563 = vpop.permute.xlu0 %562
  %564 = vrot.lane.b32.xlu0 %v554, 127
  %v565 = vpop.permute.xlu0 %564
  %566 = vrot.lane.b32.xlu0 %v555, 127
  %v567 = vpop.permute.xlu0 %566
  %v568 = vsel %vm273, %v561, %v563
  %v569 = vsel %vm273, %v563, %v565
  %v570 = vsel %vm273, %v565, %v567
  %v574 = vadd.f32 %v476, %v568
  %v575 = vadd.f32 %v477, %v569
  %v576 = vadd.f32 %v478, %v570
  %v577 = vld [vmem:[%s204] ss:$4 sm:$0xf]
  %v579 = vlaneseq
  %v580 = vshrl.u32 %v579, 7
  %v581 = vsub.s32 0, %v580
  %v582 = vrot.slane %v577, %v581
  %v583 = vlaneseq
  %v584 = vshrl.u32 %v583, 7
  %v585 = vsub.s32 1, %v584
  %v586 = vrot.slane %v577, %v585
  %v587 = vlaneseq
  %v588 = vshrl.u32 %v587, 7
  %v589 = vsub.s32 2, %v588
  %v590 = vrot.slane %v577, %v589
  %v591 = vlaneseq
  %v592 = vshrl.u32 %v591, 7
  %v593 = vsub.s32 3, %v592
  %v594 = vrot.slane %v577, %v593
  %v599 = vmul.f32 %v529, %v582
  %v600 = vmul.f32 %v529, %v586
  %v601 = vmul.f32 %v529, %v590
  %v602 = vmul.f32 %v529, %v594
  %607 = vrot.lane.b32.xlu0 %v599, 127
  %v608 = vpop.permute.xlu0 %607
  %609 = vrot.lane.b32.xlu0 %v600, 127
  %v610 = vpop.permute.xlu0 %609
  %611 = vrot.lane.b32.xlu0 %v601, 127
  %v612 = vpop.permute.xlu0 %611
  %613 = vrot.lane.b32.xlu0 %v602, 127
  %v614 = vpop.permute.xlu0 %613
  %v615 = vsel %vm273, %v608, %v610
  %v616 = vsel %vm273, %v610, %v612
  %v617 = vsel %vm273, %v612, %v614
  %v621 = vadd.f32 %v523, %v615
  %v622 = vadd.f32 %v524, %v616
  %v623 = vadd.f32 %v525, %v617
  %s624 = scalar_lea.vmem %s1, 16
  %v625 = vld [vmem:[%s624] sm:$0xff]
  %627 = vset.pattern.permute.xlu0 0
  %628 = vperm.xlu0 %627, %v625
  %v629 = vpop.permute.xlu0 %628
  %v631 = vmul.f32 %v629, %v240
  %v632 = vmul.f32 %v629, %v244
  %v633 = vmul.f32 %v629, %v248
  %v634 = vmul.f32 %v629, %v252
  %639 = vrot.lane.b32.xlu0 %v631, 126
  %v640 = vpop.permute.xlu0 %639
  %641 = vrot.lane.b32.xlu0 %v632, 126
  %v642 = vpop.permute.xlu0 %641
  %643 = vrot.lane.b32.xlu0 %v633, 126
  %v644 = vpop.permute.xlu0 %643
  %645 = vrot.lane.b32.xlu0 %v634, 126
  %v646 = vpop.permute.xlu0 %645
  %vm647 = vcmask 1031168
  %v648 = vsel %vm647, %v640, %v642
  %v649 = vsel %vm647, %v642, %v644
  %v650 = vsel %vm647, %v644, %v646
  %v654 = vadd.f32 %v574, %v648
  %v655 = vadd.f32 %v575, %v649
  %v656 = vadd.f32 %v576, %v650
  %v657 = vmul.f32 %v629, %v288
  %v658 = vmul.f32 %v629, %v292
  %v659 = vmul.f32 %v629, %v296
  %v660 = vmul.f32 %v629, %v300
  %665 = vrot.lane.b32.xlu0 %v657, 126
  %v666 = vpop.permute.xlu0 %665
  %667 = vrot.lane.b32.xlu0 %v658, 126
  %v668 = vpop.permute.xlu0 %667
  %669 = vrot.lane.b32.xlu0 %v659, 126
  %v670 = vpop.permute.xlu0 %669
  %671 = vrot.lane.b32.xlu0 %v660, 126
  %v672 = vpop.permute.xlu0 %671
  %v673 = vsel %vm647, %v666, %v668
  %v674 = vsel %vm647, %v668, %v670
  %v675 = vsel %vm647, %v670, %v672
  %v679 = vadd.f32 %v621, %v673
  %v680 = vadd.f32 %v622, %v674
  %v681 = vadd.f32 %v623, %v675
  %682 = vset.pattern.permute.xlu0 1
  %683 = vperm.xlu0 %682, %v625
  %v684 = vpop.permute.xlu0 %683
  %v686 = vmul.f32 %v684, %v339
  %v687 = vmul.f32 %v684, %v343
  %v688 = vmul.f32 %v684, %v347
  %v689 = vmul.f32 %v684, %v351
  %694 = vrot.lane.b32.xlu0 %v686, 126
  %v695 = vpop.permute.xlu0 %694
  %696 = vrot.lane.b32.xlu0 %v687, 126
  %v697 = vpop.permute.xlu0 %696
  %698 = vrot.lane.b32.xlu0 %v688, 126
  %v699 = vpop.permute.xlu0 %698
  %700 = vrot.lane.b32.xlu0 %v689, 126
  %v701 = vpop.permute.xlu0 %700
  %v702 = vsel %vm647, %v695, %v697
  %v703 = vsel %vm647, %v697, %v699
  %v704 = vsel %vm647, %v699, %v701
  %v708 = vadd.f32 %v654, %v702
  %v709 = vadd.f32 %v655, %v703
  %v710 = vadd.f32 %v656, %v704
  %v711 = vmul.f32 %v684, %v386
  %v712 = vmul.f32 %v684, %v390
  %v713 = vmul.f32 %v684, %v394
  %v714 = vmul.f32 %v684, %v398
  %719 = vrot.lane.b32.xlu0 %v711, 126
  %v720 = vpop.permute.xlu0 %719
  %721 = vrot.lane.b32.xlu0 %v712, 126
  %v722 = vpop.permute.xlu0 %721
  %723 = vrot.lane.b32.xlu0 %v713, 126
  %v724 = vpop.permute.xlu0 %723
  %725 = vrot.lane.b32.xlu0 %v714, 126
  %v726 = vpop.permute.xlu0 %725
  %v727 = vsel %vm647, %v720, %v722
  %v728 = vsel %vm647, %v722, %v724
  %v729 = vsel %vm647, %v724, %v726
  %v733 = vadd.f32 %v679, %v727
  %v734 = vadd.f32 %v680, %v728
  %v735 = vadd.f32 %v681, %v729
  %736 = vset.pattern.permute.xlu0 2
  %737 = vperm.xlu0 %736, %v625
  %v738 = vpop.permute.xlu0 %737
  %v740 = vmul.f32 %v738, %v437
  %v741 = vmul.f32 %v738, %v441
  %v742 = vmul.f32 %v738, %v445
  %v743 = vmul.f32 %v738, %v449
  %748 = vrot.lane.b32.xlu0 %v740, 126
  %v749 = vpop.permute.xlu0 %748
  %750 = vrot.lane.b32.xlu0 %v741, 126
  %v751 = vpop.permute.xlu0 %750
  %752 = vrot.lane.b32.xlu0 %v742, 126
  %v753 = vpop.permute.xlu0 %752
  %754 = vrot.lane.b32.xlu0 %v743, 126
  %v755 = vpop.permute.xlu0 %754
  %v756 = vsel %vm647, %v749, %v751
  %v757 = vsel %vm647, %v751, %v753
  %v758 = vsel %vm647, %v753, %v755
  %v762 = vadd.f32 %v708, %v756
  %v763 = vadd.f32 %v709, %v757
  %v764 = vadd.f32 %v710, %v758
  %v765 = vmul.f32 %v738, %v484
  %v766 = vmul.f32 %v738, %v488
  %v767 = vmul.f32 %v738, %v492
  %v768 = vmul.f32 %v738, %v496
  %773 = vrot.lane.b32.xlu0 %v765, 126
  %v774 = vpop.permute.xlu0 %773
  %775 = vrot.lane.b32.xlu0 %v766, 126
  %v776 = vpop.permute.xlu0 %775
  %777 = vrot.lane.b32.xlu0 %v767, 126
  %v778 = vpop.permute.xlu0 %777
  %779 = vrot.lane.b32.xlu0 %v768, 126
  %v780 = vpop.permute.xlu0 %779
  %v781 = vsel %vm647, %v774, %v776
  %v782 = vsel %vm647, %v776, %v778
  %v783 = vsel %vm647, %v778, %v780
  %v787 = vadd.f32 %v733, %v781
  %v788 = vadd.f32 %v734, %v782
  %v789 = vadd.f32 %v735, %v783
  %790 = vset.pattern.permute.xlu0 3
  %791 = vperm.xlu0 %790, %v625
  %v792 = vpop.permute.xlu0 %791
  %v794 = vmul.f32 %v792, %v535
  %v795 = vmul.f32 %v792, %v539
  %v796 = vmul.f32 %v792, %v543
  %v797 = vmul.f32 %v792, %v547
  %802 = vrot.lane.b32.xlu0 %v794, 126
  %v803 = vpop.permute.xlu0 %802
  %804 = vrot.lane.b32.xlu0 %v795, 126
  %v805 = vpop.permute.xlu0 %804
  %806 = vrot.lane.b32.xlu0 %v796, 126
  %v807 = vpop.permute.xlu0 %806
  %808 = vrot.lane.b32.xlu0 %v797, 126
  %v809 = vpop.permute.xlu0 %808
  %v810 = vsel %vm647, %v803, %v805
  %v811 = vsel %vm647, %v805, %v807
  %v812 = vsel %vm647, %v807, %v809
  %v816 = vadd.f32 %v762, %v810
  %v817 = vadd.f32 %v763, %v811
  %v818 = vadd.f32 %v764, %v812
  %v819 = vmul.f32 %v792, %v582
  %v820 = vmul.f32 %v792, %v586
  %v821 = vmul.f32 %v792, %v590
  %v822 = vmul.f32 %v792, %v594
  %827 = vrot.lane.b32.xlu0 %v819, 126
  %v828 = vpop.permute.xlu0 %827
  %829 = vrot.lane.b32.xlu0 %v820, 126
  %v830 = vpop.permute.xlu0 %829
  %831 = vrot.lane.b32.xlu0 %v821, 126
  %v832 = vpop.permute.xlu0 %831
  %833 = vrot.lane.b32.xlu0 %v822, 126
  %v834 = vpop.permute.xlu0 %833
  %v835 = vsel %vm647, %v828, %v830
  %v836 = vsel %vm647, %v830, %v832
  %v837 = vsel %vm647, %v832, %v834
  %v841 = vadd.f32 %v787, %v835
  %v842 = vadd.f32 %v788, %v836
  %v843 = vadd.f32 %v789, %v837
  %s844 = scalar_lea.vmem %s1, 24
  %v845 = vld [vmem:[%s844] sm:$0xff]
  %847 = vset.pattern.permute.xlu0 0
  %848 = vperm.xlu0 %847, %v845
  %v849 = vpop.permute.xlu0 %848
  %v851 = vmul.f32 %v849, %v240
  %v852 = vmul.f32 %v849, %v244
  %v853 = vmul.f32 %v849, %v248
  %v854 = vmul.f32 %v849, %v252
  %859 = vrot.lane.b32.xlu0 %v851, 104
  %v860 = vpop.permute.xlu0 %859
  %861 = vrot.lane.b32.xlu0 %v852, 104
  %v862 = vpop.permute.xlu0 %861
  %863 = vrot.lane.b32.xlu0 %v853, 104
  %v864 = vpop.permute.xlu0 %863
  %865 = vrot.lane.b32.xlu0 %v854, 104
  %v866 = vpop.permute.xlu0 %865
  %vm867 = vcmask 850944
  %v868 = vsel %vm867, %v860, %v862
  %v869 = vsel %vm867, %v862, %v864
  %v870 = vsel %vm867, %v864, %v866
  %v874 = vadd.f32 %v816, %v868
  %v875 = vadd.f32 %v817, %v869
  %v876 = vadd.f32 %v818, %v870
  %v877 = vmul.f32 %v849, %v288
  %v878 = vmul.f32 %v849, %v292
  %v879 = vmul.f32 %v849, %v296
  %v880 = vmul.f32 %v849, %v300
  %885 = vrot.lane.b32.xlu0 %v877, 104
  %v886 = vpop.permute.xlu0 %885
  %887 = vrot.lane.b32.xlu0 %v878, 104
  %v888 = vpop.permute.xlu0 %887
  %889 = vrot.lane.b32.xlu0 %v879, 104
  %v890 = vpop.permute.xlu0 %889
  %891 = vrot.lane.b32.xlu0 %v880, 104
  %v892 = vpop.permute.xlu0 %891
  %v893 = vsel %vm867, %v886, %v888
  %v894 = vsel %vm867, %v888, %v890
  %v895 = vsel %vm867, %v890, %v892
  %v899 = vadd.f32 %v841, %v893
  %v900 = vadd.f32 %v842, %v894
  %v901 = vadd.f32 %v843, %v895
  %902 = vset.pattern.permute.xlu0 1
  %903 = vperm.xlu0 %902, %v845
  %v904 = vpop.permute.xlu0 %903
  %v906 = vmul.f32 %v904, %v339
  %v907 = vmul.f32 %v904, %v343
  %v908 = vmul.f32 %v904, %v347
  %v909 = vmul.f32 %v904, %v351
  %914 = vrot.lane.b32.xlu0 %v906, 104
  %v915 = vpop.permute.xlu0 %914
  %916 = vrot.lane.b32.xlu0 %v907, 104
  %v917 = vpop.permute.xlu0 %916
  %918 = vrot.lane.b32.xlu0 %v908, 104
  %v919 = vpop.permute.xlu0 %918
  %920 = vrot.lane.b32.xlu0 %v909, 104
  %v921 = vpop.permute.xlu0 %920
  %v922 = vsel %vm867, %v915, %v917
  %v923 = vsel %vm867, %v917, %v919
  %v924 = vsel %vm867, %v919, %v921
  %v928 = vadd.f32 %v874, %v922
  %v929 = vadd.f32 %v875, %v923
  %v930 = vadd.f32 %v876, %v924
  %v931 = vmul.f32 %v904, %v386
  %v932 = vmul.f32 %v904, %v390
  %v933 = vmul.f32 %v904, %v394
  %v934 = vmul.f32 %v904, %v398
  %939 = vrot.lane.b32.xlu0 %v931, 104
  %v940 = vpop.permute.xlu0 %939
  %941 = vrot.lane.b32.xlu0 %v932, 104
  %v942 = vpop.permute.xlu0 %941
  %943 = vrot.lane.b32.xlu0 %v933, 104
  %v944 = vpop.permute.xlu0 %943
  %945 = vrot.lane.b32.xlu0 %v934, 104
  %v946 = vpop.permute.xlu0 %945
  %v947 = vsel %vm867, %v940, %v942
  %v948 = vsel %vm867, %v942, %v944
  %v949 = vsel %vm867, %v944, %v946
  %v953 = vadd.f32 %v899, %v947
  %v954 = vadd.f32 %v900, %v948
  %v955 = vadd.f32 %v901, %v949
  %956 = vset.pattern.permute.xlu0 2
  %957 = vperm.xlu0 %956, %v845
  %v958 = vpop.permute.xlu0 %957
  %v960 = vmul.f32 %v958, %v437
  %v961 = vmul.f32 %v958, %v441
  %v962 = vmul.f32 %v958, %v445
  %v963 = vmul.f32 %v958, %v449
  %968 = vrot.lane.b32.xlu0 %v960, 104
  %v969 = vpop.permute.xlu0 %968
  %970 = vrot.lane.b32.xlu0 %v961, 104
  %v971 = vpop.permute.xlu0 %970
  %972 = vrot.lane.b32.xlu0 %v962, 104
  %v973 = vpop.permute.xlu0 %972
  %974 = vrot.lane.b32.xlu0 %v963, 104
  %v975 = vpop.permute.xlu0 %974
  %v976 = vsel %vm867, %v969, %v971
  %v977 = vsel %vm867, %v971, %v973
  %v978 = vsel %vm867, %v973, %v975
  %v982 = vadd.f32 %v928, %v976
  %v983 = vadd.f32 %v929, %v977
  %v984 = vadd.f32 %v930, %v978
  %v985 = vmul.f32 %v958, %v484
  %v986 = vmul.f32 %v958, %v488
  %v987 = vmul.f32 %v958, %v492
  %v988 = vmul.f32 %v958, %v496
  %993 = vrot.lane.b32.xlu0 %v985, 104
  %v994 = vpop.permute.xlu0 %993
  %995 = vrot.lane.b32.xlu0 %v986, 104
  %v996 = vpop.permute.xlu0 %995
  %997 = vrot.lane.b32.xlu0 %v987, 104
  %v998 = vpop.permute.xlu0 %997
  %999 = vrot.lane.b32.xlu0 %v988, 104
  %v1000 = vpop.permute.xlu0 %999
  %v1001 = vsel %vm867, %v994, %v996
  %v1002 = vsel %vm867, %v996, %v998
  %v1003 = vsel %vm867, %v998, %v1000
  %v1007 = vadd.f32 %v953, %v1001
  %v1008 = vadd.f32 %v954, %v1002
  %v1009 = vadd.f32 %v955, %v1003
  %1010 = vset.pattern.permute.xlu0 3
  %1011 = vperm.xlu0 %1010, %v845
  %v1012 = vpop.permute.xlu0 %1011
  %v1014 = vmul.f32 %v1012, %v535
  %v1015 = vmul.f32 %v1012, %v539
  %v1016 = vmul.f32 %v1012, %v543
  %v1017 = vmul.f32 %v1012, %v547
  %1022 = vrot.lane.b32.xlu0 %v1014, 104
  %v1023 = vpop.permute.xlu0 %1022
  %1024 = vrot.lane.b32.xlu0 %v1015, 104
  %v1025 = vpop.permute.xlu0 %1024
  %1026 = vrot.lane.b32.xlu0 %v1016, 104
  %v1027 = vpop.permute.xlu0 %1026
  %1028 = vrot.lane.b32.xlu0 %v1017, 104
  %v1029 = vpop.permute.xlu0 %1028
  %v1030 = vsel %vm867, %v1023, %v1025
  %v1031 = vsel %vm867, %v1025, %v1027
  %v1032 = vsel %vm867, %v1027, %v1029
  %v1036 = vadd.f32 %v982, %v1030
  %v1037 = vadd.f32 %v983, %v1031
  %v1038 = vadd.f32 %v984, %v1032
  %v1039 = vmul.f32 %v1012, %v582
  %v1040 = vmul.f32 %v1012, %v586
  %v1041 = vmul.f32 %v1012, %v590
  %v1042 = vmul.f32 %v1012, %v594
  %1047 = vrot.lane.b32.xlu0 %v1039, 104
  %v1048 = vpop.permute.xlu0 %1047
  %1049 = vrot.lane.b32.xlu0 %v1040, 104
  %v1050 = vpop.permute.xlu0 %1049
  %1051 = vrot.lane.b32.xlu0 %v1041, 104
  %v1052 = vpop.permute.xlu0 %1051
  %1053 = vrot.lane.b32.xlu0 %v1042, 104
  %v1054 = vpop.permute.xlu0 %1053
  %v1055 = vsel %vm867, %v1048, %v1050
  %v1056 = vsel %vm867, %v1050, %v1052
  %v1057 = vsel %vm867, %v1052, %v1054
  %v1061 = vadd.f32 %v1007, %v1055
  %v1062 = vadd.f32 %v1008, %v1056
  %v1063 = vadd.f32 %v1009, %v1057
  %s1064 = scalar_lea.vmem %s1, 32
  %v1065 = vld [vmem:[%s1064] sm:$0xff]
  %1067 = vset.pattern.permute.xlu0 0
  %1068 = vperm.xlu0 %1067, %v1065
  %v1069 = vpop.permute.xlu0 %1068
  %v1071 = vmul.f32 %v1069, %v240
  %v1072 = vmul.f32 %v1069, %v244
  %v1073 = vmul.f32 %v1069, %v248
  %v1074 = vmul.f32 %v1069, %v252
  %1079 = vrot.lane.b32.xlu0 %v1071, 103
  %v1080 = vpop.permute.xlu0 %1079
  %1081 = vrot.lane.b32.xlu0 %v1072, 103
  %v1082 = vpop.permute.xlu0 %1081
  %1083 = vrot.lane.b32.xlu0 %v1073, 103
  %v1084 = vpop.permute.xlu0 %1083
  %1085 = vrot.lane.b32.xlu0 %v1074, 103
  %v1086 = vpop.permute.xlu0 %1085
  %vm1087 = vcmask 842752
  %v1088 = vsel %vm1087, %v1080, %v1082
  %v1089 = vsel %vm1087, %v1082, %v1084
  %v1090 = vsel %vm1087, %v1084, %v1086
  %v1094 = vadd.f32 %v1036, %v1088
  %v1095 = vadd.f32 %v1037, %v1089
  %v1096 = vadd.f32 %v1038, %v1090
  %v1097 = vmul.f32 %v1069, %v288
  %v1098 = vmul.f32 %v1069, %v292
  %v1099 = vmul.f32 %v1069, %v296
  %v1100 = vmul.f32 %v1069, %v300
  %1105 = vrot.lane.b32.xlu0 %v1097, 103
  %v1106 = vpop.permute.xlu0 %1105
  %1107 = vrot.lane.b32.xlu0 %v1098, 103
  %v1108 = vpop.permute.xlu0 %1107
  %1109 = vrot.lane.b32.xlu0 %v1099, 103
  %v1110 = vpop.permute.xlu0 %1109
  %1111 = vrot.lane.b32.xlu0 %v1100, 103
  %v1112 = vpop.permute.xlu0 %1111
  %v1113 = vsel %vm1087, %v1106, %v1108
  %v1114 = vsel %vm1087, %v1108, %v1110
  %v1115 = vsel %vm1087, %v1110, %v1112
  %v1119 = vadd.f32 %v1061, %v1113
  %v1120 = vadd.f32 %v1062, %v1114
  %v1121 = vadd.f32 %v1063, %v1115
  %1122 = vset.pattern.permute.xlu0 1
  %1123 = vperm.xlu0 %1122, %v1065
  %v1124 = vpop.permute.xlu0 %1123
  %v1126 = vmul.f32 %v1124, %v339
  %v1127 = vmul.f32 %v1124, %v343
  %v1128 = vmul.f32 %v1124, %v347
  %v1129 = vmul.f32 %v1124, %v351
  %1134 = vrot.lane.b32.xlu0 %v1126, 103
  %v1135 = vpop.permute.xlu0 %1134
  %1136 = vrot.lane.b32.xlu0 %v1127, 103
  %v1137 = vpop.permute.xlu0 %1136
  %1138 = vrot.lane.b32.xlu0 %v1128, 103
  %v1139 = vpop.permute.xlu0 %1138
  %1140 = vrot.lane.b32.xlu0 %v1129, 103
  %v1141 = vpop.permute.xlu0 %1140
  %v1142 = vsel %vm1087, %v1135, %v1137
  %v1143 = vsel %vm1087, %v1137, %v1139
  %v1144 = vsel %vm1087, %v1139, %v1141
  %v1148 = vadd.f32 %v1094, %v1142
  %v1149 = vadd.f32 %v1095, %v1143
  %v1150 = vadd.f32 %v1096, %v1144
  %v1151 = vmul.f32 %v1124, %v386
  %v1152 = vmul.f32 %v1124, %v390
  %v1153 = vmul.f32 %v1124, %v394
  %v1154 = vmul.f32 %v1124, %v398
  %1159 = vrot.lane.b32.xlu0 %v1151, 103
  %v1160 = vpop.permute.xlu0 %1159
  %1161 = vrot.lane.b32.xlu0 %v1152, 103
  %v1162 = vpop.permute.xlu0 %1161
  %1163 = vrot.lane.b32.xlu0 %v1153, 103
  %v1164 = vpop.permute.xlu0 %1163
  %1165 = vrot.lane.b32.xlu0 %v1154, 103
  %v1166 = vpop.permute.xlu0 %1165
  %v1167 = vsel %vm1087, %v1160, %v1162
  %v1168 = vsel %vm1087, %v1162, %v1164
  %v1169 = vsel %vm1087, %v1164, %v1166
  %v1173 = vadd.f32 %v1119, %v1167
  %v1174 = vadd.f32 %v1120, %v1168
  %v1175 = vadd.f32 %v1121, %v1169
  %1176 = vset.pattern.permute.xlu0 2
  %1177 = vperm.xlu0 %1176, %v1065
  %v1178 = vpop.permute.xlu0 %1177
  %v1180 = vmul.f32 %v1178, %v437
  %v1181 = vmul.f32 %v1178, %v441
  %v1182 = vmul.f32 %v1178, %v445
  %v1183 = vmul.f32 %v1178, %v449
  %1188 = vrot.lane.b32.xlu0 %v1180, 103
  %v1189 = vpop.permute.xlu0 %1188
  %1190 = vrot.lane.b32.xlu0 %v1181, 103
  %v1191 = vpop.permute.xlu0 %1190
  %1192 = vrot.lane.b32.xlu0 %v1182, 103
  %v1193 = vpop.permute.xlu0 %1192
  %1194 = vrot.lane.b32.xlu0 %v1183, 103
  %v1195 = vpop.permute.xlu0 %1194
  %v1196 = vsel %vm1087, %v1189, %v1191
  %v1197 = vsel %vm1087, %v1191, %v1193
  %v1198 = vsel %vm1087, %v1193, %v1195
  %v1202 = vadd.f32 %v1148, %v1196
  %v1203 = vadd.f32 %v1149, %v1197
  %v1204 = vadd.f32 %v1150, %v1198
  %v1205 = vmul.f32 %v1178, %v484
  %v1206 = vmul.f32 %v1178, %v488
  %v1207 = vmul.f32 %v1178, %v492
  %v1208 = vmul.f32 %v1178, %v496
  %1213 = vrot.lane.b32.xlu0 %v1205, 103
  %v1214 = vpop.permute.xlu0 %1213
  %1215 = vrot.lane.b32.xlu0 %v1206, 103
  %v1216 = vpop.permute.xlu0 %1215
  %1217 = vrot.lane.b32.xlu0 %v1207, 103
  %v1218 = vpop.permute.xlu0 %1217
  %1219 = vrot.lane.b32.xlu0 %v1208, 103
  %v1220 = vpop.permute.xlu0 %1219
  %v1221 = vsel %vm1087, %v1214, %v1216
  %v1222 = vsel %vm1087, %v1216, %v1218
  %v1223 = vsel %vm1087, %v1218, %v1220
  %v1227 = vadd.f32 %v1173, %v1221
  %v1228 = vadd.f32 %v1174, %v1222
  %v1229 = vadd.f32 %v1175, %v1223
  %1230 = vset.pattern.permute.xlu0 3
  %1231 = vperm.xlu0 %1230, %v1065
  %v1232 = vpop.permute.xlu0 %1231
  %v1234 = vmul.f32 %v1232, %v535
  %v1235 = vmul.f32 %v1232, %v539
  %v1236 = vmul.f32 %v1232, %v543
  %v1237 = vmul.f32 %v1232, %v547
  %1242 = vrot.lane.b32.xlu0 %v1234, 103
  %v1243 = vpop.permute.xlu0 %1242
  %1244 = vrot.lane.b32.xlu0 %v1235, 103
  %v1245 = vpop.permute.xlu0 %1244
  %1246 = vrot.lane.b32.xlu0 %v1236, 103
  %v1247 = vpop.permute.xlu0 %1246
  %1248 = vrot.lane.b32.xlu0 %v1237, 103
  %v1249 = vpop.permute.xlu0 %1248
  %v1250 = vsel %vm1087, %v1243, %v1245
  %v1251 = vsel %vm1087, %v1245, %v1247
  %v1252 = vsel %vm1087, %v1247, %v1249
  %v1256 = vadd.f32 %v1202, %v1250
  %v1257 = vadd.f32 %v1203, %v1251
  %v1258 = vadd.f32 %v1204, %v1252
  %v1259 = vmul.f32 %v1232, %v582
  %v1260 = vmul.f32 %v1232, %v586
  %v1261 = vmul.f32 %v1232, %v590
  %v1262 = vmul.f32 %v1232, %v594
  %1267 = vrot.lane.b32.xlu0 %v1259, 103
  %v1268 = vpop.permute.xlu0 %1267
  %1269 = vrot.lane.b32.xlu0 %v1260, 103
  %v1270 = vpop.permute.xlu0 %1269
  %1271 = vrot.lane.b32.xlu0 %v1261, 103
  %v1272 = vpop.permute.xlu0 %1271
  %1273 = vrot.lane.b32.xlu0 %v1262, 103
  %v1274 = vpop.permute.xlu0 %1273
  %v1275 = vsel %vm1087, %v1268, %v1270
  %v1276 = vsel %vm1087, %v1270, %v1272
  %v1277 = vsel %vm1087, %v1272, %v1274
  %v1281 = vadd.f32 %v1227, %v1275
  %v1282 = vadd.f32 %v1228, %v1276
  %v1283 = vadd.f32 %v1229, %v1277
  %s1284 = scalar_lea.vmem %s1, 40
  %v1285 = vld [vmem:[%s1284] sm:$0xff]
  %1287 = vset.pattern.permute.xlu0 0
  %1288 = vperm.xlu0 %1287, %v1285
  %v1289 = vpop.permute.xlu0 %1288
  %v1291 = vmul.f32 %v1289, %v240
  %v1292 = vmul.f32 %v1289, %v244
  %v1293 = vmul.f32 %v1289, %v248
  %v1294 = vmul.f32 %v1289, %v252
  %1299 = vrot.lane.b32.xlu0 %v1291, 102
  %v1300 = vpop.permute.xlu0 %1299
  %1301 = vrot.lane.b32.xlu0 %v1292, 102
  %v1302 = vpop.permute.xlu0 %1301
  %1303 = vrot.lane.b32.xlu0 %v1293, 102
  %v1304 = vpop.permute.xlu0 %1303
  %1305 = vrot.lane.b32.xlu0 %v1294, 102
  %v1306 = vpop.permute.xlu0 %1305
  %vm1307 = vcmask 834560
  %v1308 = vsel %vm1307, %v1300, %v1302
  %v1309 = vsel %vm1307, %v1302, %v1304
  %v1310 = vsel %vm1307, %v1304, %v1306
  %v1314 = vadd.f32 %v1256, %v1308
  %v1315 = vadd.f32 %v1257, %v1309
  %v1316 = vadd.f32 %v1258, %v1310
  %v1317 = vmul.f32 %v1289, %v288
  %v1318 = vmul.f32 %v1289, %v292
  %v1319 = vmul.f32 %v1289, %v296
  %v1320 = vmul.f32 %v1289, %v300
  %1325 = vrot.lane.b32.xlu0 %v1317, 102
  %v1326 = vpop.permute.xlu0 %1325
  %1327 = vrot.lane.b32.xlu0 %v1318, 102
  %v1328 = vpop.permute.xlu0 %1327
  %1329 = vrot.lane.b32.xlu0 %v1319, 102
  %v1330 = vpop.permute.xlu0 %1329
  %1331 = vrot.lane.b32.xlu0 %v1320, 102
  %v1332 = vpop.permute.xlu0 %1331
  %v1333 = vsel %vm1307, %v1326, %v1328
  %v1334 = vsel %vm1307, %v1328, %v1330
  %v1335 = vsel %vm1307, %v1330, %v1332
  %v1339 = vadd.f32 %v1281, %v1333
  %v1340 = vadd.f32 %v1282, %v1334
  %v1341 = vadd.f32 %v1283, %v1335
  %1342 = vset.pattern.permute.xlu0 1
  %1343 = vperm.xlu0 %1342, %v1285
  %v1344 = vpop.permute.xlu0 %1343
  %v1346 = vmul.f32 %v1344, %v339
  %v1347 = vmul.f32 %v1344, %v343
  %v1348 = vmul.f32 %v1344, %v347
  %v1349 = vmul.f32 %v1344, %v351
  %1354 = vrot.lane.b32.xlu0 %v1346, 102
  %v1355 = vpop.permute.xlu0 %1354
  %1356 = vrot.lane.b32.xlu0 %v1347, 102
  %v1357 = vpop.permute.xlu0 %1356
  %1358 = vrot.lane.b32.xlu0 %v1348, 102
  %v1359 = vpop.permute.xlu0 %1358
  %1360 = vrot.lane.b32.xlu0 %v1349, 102
  %v1361 = vpop.permute.xlu0 %1360
  %v1362 = vsel %vm1307, %v1355, %v1357
  %v1363 = vsel %vm1307, %v1357, %v1359
  %v1364 = vsel %vm1307, %v1359, %v1361
  %v1368 = vadd.f32 %v1314, %v1362
  %v1369 = vadd.f32 %v1315, %v1363
  %v1370 = vadd.f32 %v1316, %v1364
  %v1371 = vmul.f32 %v1344, %v386
  %v1372 = vmul.f32 %v1344, %v390
  %v1373 = vmul.f32 %v1344, %v394
  %v1374 = vmul.f32 %v1344, %v398
  %1379 = vrot.lane.b32.xlu0 %v1371, 102
  %v1380 = vpop.permute.xlu0 %1379
  %1381 = vrot.lane.b32.xlu0 %v1372, 102
  %v1382 = vpop.permute.xlu0 %1381
  %1383 = vrot.lane.b32.xlu0 %v1373, 102
  %v1384 = vpop.permute.xlu0 %1383
  %1385 = vrot.lane.b32.xlu0 %v1374, 102
  %v1386 = vpop.permute.xlu0 %1385
  %v1387 = vsel %vm1307, %v1380, %v1382
  %v1388 = vsel %vm1307, %v1382, %v1384
  %v1389 = vsel %vm1307, %v1384, %v1386
  %v1393 = vadd.f32 %v1339, %v1387
  %v1394 = vadd.f32 %v1340, %v1388
  %v1395 = vadd.f32 %v1341, %v1389
  %1396 = vset.pattern.permute.xlu0 2
  %1397 = vperm.xlu0 %1396, %v1285
  %v1398 = vpop.permute.xlu0 %1397
  %v1400 = vmul.f32 %v1398, %v437
  %v1401 = vmul.f32 %v1398, %v441
  %v1402 = vmul.f32 %v1398, %v445
  %v1403 = vmul.f32 %v1398, %v449
  %1408 = vrot.lane.b32.xlu0 %v1400, 102
  %v1409 = vpop.permute.xlu0 %1408
  %1410 = vrot.lane.b32.xlu0 %v1401, 102
  %v1411 = vpop.permute.xlu0 %1410
  %1412 = vrot.lane.b32.xlu0 %v1402, 102
  %v1413 = vpop.permute.xlu0 %1412
  %1414 = vrot.lane.b32.xlu0 %v1403, 102
  %v1415 = vpop.permute.xlu0 %1414
  %v1416 = vsel %vm1307, %v1409, %v1411
  %v1417 = vsel %vm1307, %v1411, %v1413
  %v1418 = vsel %vm1307, %v1413, %v1415
  %v1422 = vadd.f32 %v1368, %v1416
  %v1423 = vadd.f32 %v1369, %v1417
  %v1424 = vadd.f32 %v1370, %v1418
  %v1425 = vmul.f32 %v1398, %v484
  %v1426 = vmul.f32 %v1398, %v488
  %v1427 = vmul.f32 %v1398, %v492
  %v1428 = vmul.f32 %v1398, %v496
  %1433 = vrot.lane.b32.xlu0 %v1425, 102
  %v1434 = vpop.permute.xlu0 %1433
  %1435 = vrot.lane.b32.xlu0 %v1426, 102
  %v1436 = vpop.permute.xlu0 %1435
  %1437 = vrot.lane.b32.xlu0 %v1427, 102
  %v1438 = vpop.permute.xlu0 %1437
  %1439 = vrot.lane.b32.xlu0 %v1428, 102
  %v1440 = vpop.permute.xlu0 %1439
  %v1441 = vsel %vm1307, %v1434, %v1436
  %v1442 = vsel %vm1307, %v1436, %v1438
  %v1443 = vsel %vm1307, %v1438, %v1440
  %v1447 = vadd.f32 %v1393, %v1441
  %v1448 = vadd.f32 %v1394, %v1442
  %v1449 = vadd.f32 %v1395, %v1443
  %1450 = vset.pattern.permute.xlu0 3
  %1451 = vperm.xlu0 %1450, %v1285
  %v1452 = vpop.permute.xlu0 %1451
  %v1454 = vmul.f32 %v1452, %v535
  %v1455 = vmul.f32 %v1452, %v539
  %v1456 = vmul.f32 %v1452, %v543
  %v1457 = vmul.f32 %v1452, %v547
  %1462 = vrot.lane.b32.xlu0 %v1454, 102
  %v1463 = vpop.permute.xlu0 %1462
  %1464 = vrot.lane.b32.xlu0 %v1455, 102
  %v1465 = vpop.permute.xlu0 %1464
  %1466 = vrot.lane.b32.xlu0 %v1456, 102
  %v1467 = vpop.permute.xlu0 %1466
  %1468 = vrot.lane.b32.xlu0 %v1457, 102
  %v1469 = vpop.permute.xlu0 %1468
  %v1470 = vsel %vm1307, %v1463, %v1465
  %v1471 = vsel %vm1307, %v1465, %v1467
  %v1472 = vsel %vm1307, %v1467, %v1469
  %v1476 = vadd.f32 %v1422, %v1470
  %v1477 = vadd.f32 %v1423, %v1471
  %v1478 = vadd.f32 %v1424, %v1472
  %v1479 = vmul.f32 %v1452, %v582
  %v1480 = vmul.f32 %v1452, %v586
  %v1481 = vmul.f32 %v1452, %v590
  %v1482 = vmul.f32 %v1452, %v594
  %1487 = vrot.lane.b32.xlu0 %v1479, 102
  %v1488 = vpop.permute.xlu0 %1487
  %1489 = vrot.lane.b32.xlu0 %v1480, 102
  %v1490 = vpop.permute.xlu0 %1489
  %1491 = vrot.lane.b32.xlu0 %v1481, 102
  %v1492 = vpop.permute.xlu0 %1491
  %1493 = vrot.lane.b32.xlu0 %v1482, 102
  %v1494 = vpop.permute.xlu0 %1493
  %v1495 = vsel %vm1307, %v1488, %v1490
  %v1496 = vsel %vm1307, %v1490, %v1492
  %v1497 = vsel %vm1307, %v1492, %v1494
  %v1501 = vadd.f32 %v1447, %v1495
  %v1502 = vadd.f32 %v1448, %v1496
  %v1503 = vadd.f32 %v1449, %v1497
  %s1504 = scalar_lea.vmem %s1, 48
  %v1505 = vld [vmem:[%s1504] sm:$0xff]
  %1507 = vset.pattern.permute.xlu0 0
  %1508 = vperm.xlu0 %1507, %v1505
  %v1509 = vpop.permute.xlu0 %1508
  %v1511 = vmul.f32 %v1509, %v240
  %v1512 = vmul.f32 %v1509, %v244
  %v1513 = vmul.f32 %v1509, %v248
  %v1514 = vmul.f32 %v1509, %v252
  %1519 = vrot.lane.b32.xlu0 %v1511, 80
  %v1520 = vpop.permute.xlu0 %1519
  %1521 = vrot.lane.b32.xlu0 %v1512, 80
  %v1522 = vpop.permute.xlu0 %1521
  %1523 = vrot.lane.b32.xlu0 %v1513, 80
  %v1524 = vpop.permute.xlu0 %1523
  %1525 = vrot.lane.b32.xlu0 %v1514, 80
  %v1526 = vpop.permute.xlu0 %1525
  %vm1527 = vcmask 654336
  %v1528 = vsel %vm1527, %v1520, %v1522
  %v1529 = vsel %vm1527, %v1522, %v1524
  %v1530 = vsel %vm1527, %v1524, %v1526
  %v1534 = vadd.f32 %v1476, %v1528
  %v1535 = vadd.f32 %v1477, %v1529
  %v1536 = vadd.f32 %v1478, %v1530
  %v1537 = vmul.f32 %v1509, %v288
  %v1538 = vmul.f32 %v1509, %v292
  %v1539 = vmul.f32 %v1509, %v296
  %v1540 = vmul.f32 %v1509, %v300
  %1545 = vrot.lane.b32.xlu0 %v1537, 80
  %v1546 = vpop.permute.xlu0 %1545
  %1547 = vrot.lane.b32.xlu0 %v1538, 80
  %v1548 = vpop.permute.xlu0 %1547
  %1549 = vrot.lane.b32.xlu0 %v1539, 80
  %v1550 = vpop.permute.xlu0 %1549
  %1551 = vrot.lane.b32.xlu0 %v1540, 80
  %v1552 = vpop.permute.xlu0 %1551
  %v1553 = vsel %vm1527, %v1546, %v1548
  %v1554 = vsel %vm1527, %v1548, %v1550
  %v1555 = vsel %vm1527, %v1550, %v1552
  %v1559 = vadd.f32 %v1501, %v1553
  %v1560 = vadd.f32 %v1502, %v1554
  %v1561 = vadd.f32 %v1503, %v1555
  %1562 = vset.pattern.permute.xlu0 1
  %1563 = vperm.xlu0 %1562, %v1505
  %v1564 = vpop.permute.xlu0 %1563
  %v1566 = vmul.f32 %v1564, %v339
  %v1567 = vmul.f32 %v1564, %v343
  %v1568 = vmul.f32 %v1564, %v347
  %v1569 = vmul.f32 %v1564, %v351
  %1574 = vrot.lane.b32.xlu0 %v1566, 80
  %v1575 = vpop.permute.xlu0 %1574
  %1576 = vrot.lane.b32.xlu0 %v1567, 80
  %v1577 = vpop.permute.xlu0 %1576
  %1578 = vrot.lane.b32.xlu0 %v1568, 80
  %v1579 = vpop.permute.xlu0 %1578
  %1580 = vrot.lane.b32.xlu0 %v1569, 80
  %v1581 = vpop.permute.xlu0 %1580
  %v1582 = vsel %vm1527, %v1575, %v1577
  %v1583 = vsel %vm1527, %v1577, %v1579
  %v1584 = vsel %vm1527, %v1579, %v1581
  %v1588 = vadd.f32 %v1534, %v1582
  %v1589 = vadd.f32 %v1535, %v1583
  %v1590 = vadd.f32 %v1536, %v1584
  %v1591 = vmul.f32 %v1564, %v386
  %v1592 = vmul.f32 %v1564, %v390
  %v1593 = vmul.f32 %v1564, %v394
  %v1594 = vmul.f32 %v1564, %v398
  %1599 = vrot.lane.b32.xlu0 %v1591, 80
  %v1600 = vpop.permute.xlu0 %1599
  %1601 = vrot.lane.b32.xlu0 %v1592, 80
  %v1602 = vpop.permute.xlu0 %1601
  %1603 = vrot.lane.b32.xlu0 %v1593, 80
  %v1604 = vpop.permute.xlu0 %1603
  %1605 = vrot.lane.b32.xlu0 %v1594, 80
  %v1606 = vpop.permute.xlu0 %1605
  %v1607 = vsel %vm1527, %v1600, %v1602
  %v1608 = vsel %vm1527, %v1602, %v1604
  %v1609 = vsel %vm1527, %v1604, %v1606
  %v1613 = vadd.f32 %v1559, %v1607
  %v1614 = vadd.f32 %v1560, %v1608
  %v1615 = vadd.f32 %v1561, %v1609
  %1616 = vset.pattern.permute.xlu0 2
  %1617 = vperm.xlu0 %1616, %v1505
  %v1618 = vpop.permute.xlu0 %1617
  %v1620 = vmul.f32 %v1618, %v437
  %v1621 = vmul.f32 %v1618, %v441
  %v1622 = vmul.f32 %v1618, %v445
  %v1623 = vmul.f32 %v1618, %v449
  %1628 = vrot.lane.b32.xlu0 %v1620, 80
  %v1629 = vpop.permute.xlu0 %1628
  %1630 = vrot.lane.b32.xlu0 %v1621, 80
  %v1631 = vpop.permute.xlu0 %1630
  %1632 = vrot.lane.b32.xlu0 %v1622, 80
  %v1633 = vpop.permute.xlu0 %1632
  %1634 = vrot.lane.b32.xlu0 %v1623, 80
  %v1635 = vpop.permute.xlu0 %1634
  %v1636 = vsel %vm1527, %v1629, %v1631
  %v1637 = vsel %vm1527, %v1631, %v1633
  %v1638 = vsel %vm1527, %v1633, %v1635
  %v1642 = vadd.f32 %v1588, %v1636
  %v1643 = vadd.f32 %v1589, %v1637
  %v1644 = vadd.f32 %v1590, %v1638
  %v1645 = vmul.f32 %v1618, %v484
  %v1646 = vmul.f32 %v1618, %v488
  %v1647 = vmul.f32 %v1618, %v492
  %v1648 = vmul.f32 %v1618, %v496
  %1653 = vrot.lane.b32.xlu0 %v1645, 80
  %v1654 = vpop.permute.xlu0 %1653
  %1655 = vrot.lane.b32.xlu0 %v1646, 80
  %v1656 = vpop.permute.xlu0 %1655
  %1657 = vrot.lane.b32.xlu0 %v1647, 80
  %v1658 = vpop.permute.xlu0 %1657
  %1659 = vrot.lane.b32.xlu0 %v1648, 80
  %v1660 = vpop.permute.xlu0 %1659
  %v1661 = vsel %vm1527, %v1654, %v1656
  %v1662 = vsel %vm1527, %v1656, %v1658
  %v1663 = vsel %vm1527, %v1658, %v1660
  %v1667 = vadd.f32 %v1613, %v1661
  %v1668 = vadd.f32 %v1614, %v1662
  %v1669 = vadd.f32 %v1615, %v1663
  %1670 = vset.pattern.permute.xlu0 3
  %1671 = vperm.xlu0 %1670, %v1505
  %v1672 = vpop.permute.xlu0 %1671
  %v1674 = vmul.f32 %v1672, %v535
  %v1675 = vmul.f32 %v1672, %v539
  %v1676 = vmul.f32 %v1672, %v543
  %v1677 = vmul.f32 %v1672, %v547
  %1682 = vrot.lane.b32.xlu0 %v1674, 80
  %v1683 = vpop.permute.xlu0 %1682
  %1684 = vrot.lane.b32.xlu0 %v1675, 80
  %v1685 = vpop.permute.xlu0 %1684
  %1686 = vrot.lane.b32.xlu0 %v1676, 80
  %v1687 = vpop.permute.xlu0 %1686
  %1688 = vrot.lane.b32.xlu0 %v1677, 80
  %v1689 = vpop.permute.xlu0 %1688
  %v1690 = vsel %vm1527, %v1683, %v1685
  %v1691 = vsel %vm1527, %v1685, %v1687
  %v1692 = vsel %vm1527, %v1687, %v1689
  %v1696 = vadd.f32 %v1642, %v1690
  %v1697 = vadd.f32 %v1643, %v1691
  %v1698 = vadd.f32 %v1644, %v1692
  %v1699 = vmul.f32 %v1672, %v582
  %v1700 = vmul.f32 %v1672, %v586
  %v1701 = vmul.f32 %v1672, %v590
  %v1702 = vmul.f32 %v1672, %v594
  %1707 = vrot.lane.b32.xlu0 %v1699, 80
  %v1708 = vpop.permute.xlu0 %1707
  %1709 = vrot.lane.b32.xlu0 %v1700, 80
  %v1710 = vpop.permute.xlu0 %1709
  %1711 = vrot.lane.b32.xlu0 %v1701, 80
  %v1712 = vpop.permute.xlu0 %1711
  %1713 = vrot.lane.b32.xlu0 %v1702, 80
  %v1714 = vpop.permute.xlu0 %1713
  %v1715 = vsel %vm1527, %v1708, %v1710
  %v1716 = vsel %vm1527, %v1710, %v1712
  %v1717 = vsel %vm1527, %v1712, %v1714
  %v1721 = vadd.f32 %v1667, %v1715
  %v1722 = vadd.f32 %v1668, %v1716
  %v1723 = vadd.f32 %v1669, %v1717
  %s1724 = scalar_lea.vmem %s1, 56
  %v1725 = vld [vmem:[%s1724] sm:$0xff]
  %1727 = vset.pattern.permute.xlu0 0
  %1728 = vperm.xlu0 %1727, %v1725
  %v1729 = vpop.permute.xlu0 %1728
  %v1731 = vmul.f32 %v1729, %v240
  %v1732 = vmul.f32 %v1729, %v244
  %v1733 = vmul.f32 %v1729, %v248
  %v1734 = vmul.f32 %v1729, %v252
  %1739 = vrot.lane.b32.xlu0 %v1731, 79
  %v1740 = vpop.permute.xlu0 %1739
  %1741 = vrot.lane.b32.xlu0 %v1732, 79
  %v1742 = vpop.permute.xlu0 %1741
  %1743 = vrot.lane.b32.xlu0 %v1733, 79
  %v1744 = vpop.permute.xlu0 %1743
  %1745 = vrot.lane.b32.xlu0 %v1734, 79
  %v1746 = vpop.permute.xlu0 %1745
  %vm1747 = vcmask 646144
  %v1748 = vsel %vm1747, %v1740, %v1742
  %v1749 = vsel %vm1747, %v1742, %v1744
  %v1750 = vsel %vm1747, %v1744, %v1746
  %v1754 = vadd.f32 %v1696, %v1748
  %v1755 = vadd.f32 %v1697, %v1749
  %v1756 = vadd.f32 %v1698, %v1750
  %v1757 = vmul.f32 %v1729, %v288
  %v1758 = vmul.f32 %v1729, %v292
  %v1759 = vmul.f32 %v1729, %v296
  %v1760 = vmul.f32 %v1729, %v300
  %1765 = vrot.lane.b32.xlu0 %v1757, 79
  %v1766 = vpop.permute.xlu0 %1765
  %1767 = vrot.lane.b32.xlu0 %v1758, 79
  %v1768 = vpop.permute.xlu0 %1767
  %1769 = vrot.lane.b32.xlu0 %v1759, 79
  %v1770 = vpop.permute.xlu0 %1769
  %1771 = vrot.lane.b32.xlu0 %v1760, 79
  %v1772 = vpop.permute.xlu0 %1771
  %v1773 = vsel %vm1747, %v1766, %v1768
  %v1774 = vsel %vm1747, %v1768, %v1770
  %v1775 = vsel %vm1747, %v1770, %v1772
  %v1779 = vadd.f32 %v1721, %v1773
  %v1780 = vadd.f32 %v1722, %v1774
  %v1781 = vadd.f32 %v1723, %v1775
  %1782 = vset.pattern.permute.xlu0 1
  %1783 = vperm.xlu0 %1782, %v1725
  %v1784 = vpop.permute.xlu0 %1783
  %v1786 = vmul.f32 %v1784, %v339
  %v1787 = vmul.f32 %v1784, %v343
  %v1788 = vmul.f32 %v1784, %v347
  %v1789 = vmul.f32 %v1784, %v351
  %1794 = vrot.lane.b32.xlu0 %v1786, 79
  %v1795 = vpop.permute.xlu0 %1794
  %1796 = vrot.lane.b32.xlu0 %v1787, 79
  %v1797 = vpop.permute.xlu0 %1796
  %1798 = vrot.lane.b32.xlu0 %v1788, 79
  %v1799 = vpop.permute.xlu0 %1798
  %1800 = vrot.lane.b32.xlu0 %v1789, 79
  %v1801 = vpop.permute.xlu0 %1800
  %v1802 = vsel %vm1747, %v1795, %v1797
  %v1803 = vsel %vm1747, %v1797, %v1799
  %v1804 = vsel %vm1747, %v1799, %v1801
  %v1808 = vadd.f32 %v1754, %v1802
  %v1809 = vadd.f32 %v1755, %v1803
  %v1810 = vadd.f32 %v1756, %v1804
  %v1811 = vmul.f32 %v1784, %v386
  %v1812 = vmul.f32 %v1784, %v390
  %v1813 = vmul.f32 %v1784, %v394
  %v1814 = vmul.f32 %v1784, %v398
  %1819 = vrot.lane.b32.xlu0 %v1811, 79
  %v1820 = vpop.permute.xlu0 %1819
  %1821 = vrot.lane.b32.xlu0 %v1812, 79
  %v1822 = vpop.permute.xlu0 %1821
  %1823 = vrot.lane.b32.xlu0 %v1813, 79
  %v1824 = vpop.permute.xlu0 %1823
  %1825 = vrot.lane.b32.xlu0 %v1814, 79
  %v1826 = vpop.permute.xlu0 %1825
  %v1827 = vsel %vm1747, %v1820, %v1822
  %v1828 = vsel %vm1747, %v1822, %v1824
  %v1829 = vsel %vm1747, %v1824, %v1826
  %v1833 = vadd.f32 %v1779, %v1827
  %v1834 = vadd.f32 %v1780, %v1828
  %v1835 = vadd.f32 %v1781, %v1829
  %1836 = vset.pattern.permute.xlu0 2
  %1837 = vperm.xlu0 %1836, %v1725
  %v1838 = vpop.permute.xlu0 %1837
  %v1840 = vmul.f32 %v1838, %v437
  %v1841 = vmul.f32 %v1838, %v441
  %v1842 = vmul.f32 %v1838, %v445
  %v1843 = vmul.f32 %v1838, %v449
  %1848 = vrot.lane.b32.xlu0 %v1840, 79
  %v1849 = vpop.permute.xlu0 %1848
  %1850 = vrot.lane.b32.xlu0 %v1841, 79
  %v1851 = vpop.permute.xlu0 %1850
  %1852 = vrot.lane.b32.xlu0 %v1842, 79
  %v1853 = vpop.permute.xlu0 %1852
  %1854 = vrot.lane.b32.xlu0 %v1843, 79
  %v1855 = vpop.permute.xlu0 %1854
  %v1856 = vsel %vm1747, %v1849, %v1851
  %v1857 = vsel %vm1747, %v1851, %v1853
  %v1858 = vsel %vm1747, %v1853, %v1855
  %v1862 = vadd.f32 %v1808, %v1856
  %v1863 = vadd.f32 %v1809, %v1857
  %v1864 = vadd.f32 %v1810, %v1858
  %v1865 = vmul.f32 %v1838, %v484
  %v1866 = vmul.f32 %v1838, %v488
  %v1867 = vmul.f32 %v1838, %v492
  %v1868 = vmul.f32 %v1838, %v496
  %1873 = vrot.lane.b32.xlu0 %v1865, 79
  %v1874 = vpop.permute.xlu0 %1873
  %1875 = vrot.lane.b32.xlu0 %v1866, 79
  %v1876 = vpop.permute.xlu0 %1875
  %1877 = vrot.lane.b32.xlu0 %v1867, 79
  %v1878 = vpop.permute.xlu0 %1877
  %1879 = vrot.lane.b32.xlu0 %v1868, 79
  %v1880 = vpop.permute.xlu0 %1879
  %v1881 = vsel %vm1747, %v1874, %v1876
  %v1882 = vsel %vm1747, %v1876, %v1878
  %v1883 = vsel %vm1747, %v1878, %v1880
  %v1887 = vadd.f32 %v1833, %v1881
  %v1888 = vadd.f32 %v1834, %v1882
  %v1889 = vadd.f32 %v1835, %v1883
  %1890 = vset.pattern.permute.xlu0 3
  %1891 = vperm.xlu0 %1890, %v1725
  %v1892 = vpop.permute.xlu0 %1891
  %v1894 = vmul.f32 %v1892, %v535
  %v1895 = vmul.f32 %v1892, %v539
  %v1896 = vmul.f32 %v1892, %v543
  %v1897 = vmul.f32 %v1892, %v547
  %1902 = vrot.lane.b32.xlu0 %v1894, 79
  %v1903 = vpop.permute.xlu0 %1902
  %1904 = vrot.lane.b32.xlu0 %v1895, 79
  %v1905 = vpop.permute.xlu0 %1904
  %1906 = vrot.lane.b32.xlu0 %v1896, 79
  %v1907 = vpop.permute.xlu0 %1906
  %1908 = vrot.lane.b32.xlu0 %v1897, 79
  %v1909 = vpop.permute.xlu0 %1908
  %v1910 = vsel %vm1747, %v1903, %v1905
  %v1911 = vsel %vm1747, %v1905, %v1907
  %v1912 = vsel %vm1747, %v1907, %v1909
  %v1916 = vadd.f32 %v1862, %v1910
  %v1917 = vadd.f32 %v1863, %v1911
  %v1918 = vadd.f32 %v1864, %v1912
  %v1919 = vmul.f32 %v1892, %v582
  %v1920 = vmul.f32 %v1892, %v586
  %v1921 = vmul.f32 %v1892, %v590
  %v1922 = vmul.f32 %v1892, %v594
  %1927 = vrot.lane.b32.xlu0 %v1919, 79
  %v1928 = vpop.permute.xlu0 %1927
  %1929 = vrot.lane.b32.xlu0 %v1920, 79
  %v1930 = vpop.permute.xlu0 %1929
  %1931 = vrot.lane.b32.xlu0 %v1921, 79
  %v1932 = vpop.permute.xlu0 %1931
  %1933 = vrot.lane.b32.xlu0 %v1922, 79
  %v1934 = vpop.permute.xlu0 %1933
  %v1935 = vsel %vm1747, %v1928, %v1930
  %v1936 = vsel %vm1747, %v1930, %v1932
  %v1937 = vsel %vm1747, %v1932, %v1934
  %v1941 = vadd.f32 %v1887, %v1935
  %v1942 = vadd.f32 %v1888, %v1936
  %v1943 = vadd.f32 %v1889, %v1937
  %s1944 = scalar_lea.vmem %s1, 64
  %v1945 = vld [vmem:[%s1944] sm:$0xff]
  %1947 = vset.pattern.permute.xlu0 0
  %1948 = vperm.xlu0 %1947, %v1945
  %v1949 = vpop.permute.xlu0 %1948
  %v1951 = vmul.f32 %v1949, %v240
  %v1952 = vmul.f32 %v1949, %v244
  %v1953 = vmul.f32 %v1949, %v248
  %v1954 = vmul.f32 %v1949, %v252
  %1959 = vrot.lane.b32.xlu0 %v1951, 78
  %v1960 = vpop.permute.xlu0 %1959
  %1961 = vrot.lane.b32.xlu0 %v1952, 78
  %v1962 = vpop.permute.xlu0 %1961
  %1963 = vrot.lane.b32.xlu0 %v1953, 78
  %v1964 = vpop.permute.xlu0 %1963
  %1965 = vrot.lane.b32.xlu0 %v1954, 78
  %v1966 = vpop.permute.xlu0 %1965
  %vm1967 = vcmask 637952
  %v1968 = vsel %vm1967, %v1960, %v1962
  %v1969 = vsel %vm1967, %v1962, %v1964
  %v1970 = vsel %vm1967, %v1964, %v1966
  %v1974 = vadd.f32 %v1916, %v1968
  %v1975 = vadd.f32 %v1917, %v1969
  %v1976 = vadd.f32 %v1918, %v1970
  %v1977 = vmul.f32 %v1949, %v288
  %v1978 = vmul.f32 %v1949, %v292
  %v1979 = vmul.f32 %v1949, %v296
  %v1980 = vmul.f32 %v1949, %v300
  %1985 = vrot.lane.b32.xlu0 %v1977, 78
  %v1986 = vpop.permute.xlu0 %1985
  %1987 = vrot.lane.b32.xlu0 %v1978, 78
  %v1988 = vpop.permute.xlu0 %1987
  %1989 = vrot.lane.b32.xlu0 %v1979, 78
  %v1990 = vpop.permute.xlu0 %1989
  %1991 = vrot.lane.b32.xlu0 %v1980, 78
  %v1992 = vpop.permute.xlu0 %1991
  %v1993 = vsel %vm1967, %v1986, %v1988
  %v1994 = vsel %vm1967, %v1988, %v1990
  %v1995 = vsel %vm1967, %v1990, %v1992
  %v1999 = vadd.f32 %v1941, %v1993
  %v2000 = vadd.f32 %v1942, %v1994
  %v2001 = vadd.f32 %v1943, %v1995
  %2002 = vset.pattern.permute.xlu0 1
  %2003 = vperm.xlu0 %2002, %v1945
  %v2004 = vpop.permute.xlu0 %2003
  %v2006 = vmul.f32 %v2004, %v339
  %v2007 = vmul.f32 %v2004, %v343
  %v2008 = vmul.f32 %v2004, %v347
  %v2009 = vmul.f32 %v2004, %v351
  %2014 = vrot.lane.b32.xlu0 %v2006, 78
  %v2015 = vpop.permute.xlu0 %2014
  %2016 = vrot.lane.b32.xlu0 %v2007, 78
  %v2017 = vpop.permute.xlu0 %2016
  %2018 = vrot.lane.b32.xlu0 %v2008, 78
  %v2019 = vpop.permute.xlu0 %2018
  %2020 = vrot.lane.b32.xlu0 %v2009, 78
  %v2021 = vpop.permute.xlu0 %2020
  %v2022 = vsel %vm1967, %v2015, %v2017
  %v2023 = vsel %vm1967, %v2017, %v2019
  %v2024 = vsel %vm1967, %v2019, %v2021
  %v2028 = vadd.f32 %v1974, %v2022
  %v2029 = vadd.f32 %v1975, %v2023
  %v2030 = vadd.f32 %v1976, %v2024
  %v2031 = vmul.f32 %v2004, %v386
  %v2032 = vmul.f32 %v2004, %v390
  %v2033 = vmul.f32 %v2004, %v394
  %v2034 = vmul.f32 %v2004, %v398
  %2039 = vrot.lane.b32.xlu0 %v2031, 78
  %v2040 = vpop.permute.xlu0 %2039
  %2041 = vrot.lane.b32.xlu0 %v2032, 78
  %v2042 = vpop.permute.xlu0 %2041
  %2043 = vrot.lane.b32.xlu0 %v2033, 78
  %v2044 = vpop.permute.xlu0 %2043
  %2045 = vrot.lane.b32.xlu0 %v2034, 78
  %v2046 = vpop.permute.xlu0 %2045
  %v2047 = vsel %vm1967, %v2040, %v2042
  %v2048 = vsel %vm1967, %v2042, %v2044
  %v2049 = vsel %vm1967, %v2044, %v2046
  %v2053 = vadd.f32 %v1999, %v2047
  %v2054 = vadd.f32 %v2000, %v2048
  %v2055 = vadd.f32 %v2001, %v2049
  %2056 = vset.pattern.permute.xlu0 2
  %2057 = vperm.xlu0 %2056, %v1945
  %v2058 = vpop.permute.xlu0 %2057
  %v2060 = vmul.f32 %v2058, %v437
  %v2061 = vmul.f32 %v2058, %v441
  %v2062 = vmul.f32 %v2058, %v445
  %v2063 = vmul.f32 %v2058, %v449
  %2068 = vrot.lane.b32.xlu0 %v2060, 78
  %v2069 = vpop.permute.xlu0 %2068
  %2070 = vrot.lane.b32.xlu0 %v2061, 78
  %v2071 = vpop.permute.xlu0 %2070
  %2072 = vrot.lane.b32.xlu0 %v2062, 78
  %v2073 = vpop.permute.xlu0 %2072
  %2074 = vrot.lane.b32.xlu0 %v2063, 78
  %v2075 = vpop.permute.xlu0 %2074
  %v2076 = vsel %vm1967, %v2069, %v2071
  %v2077 = vsel %vm1967, %v2071, %v2073
  %v2078 = vsel %vm1967, %v2073, %v2075
  %v2082 = vadd.f32 %v2028, %v2076
  %v2083 = vadd.f32 %v2029, %v2077
  %v2084 = vadd.f32 %v2030, %v2078
  %v2085 = vmul.f32 %v2058, %v484
  %v2086 = vmul.f32 %v2058, %v488
  %v2087 = vmul.f32 %v2058, %v492
  %v2088 = vmul.f32 %v2058, %v496
  %2093 = vrot.lane.b32.xlu0 %v2085, 78
  %v2094 = vpop.permute.xlu0 %2093
  %2095 = vrot.lane.b32.xlu0 %v2086, 78
  %v2096 = vpop.permute.xlu0 %2095
  %2097 = vrot.lane.b32.xlu0 %v2087, 78
  %v2098 = vpop.permute.xlu0 %2097
  %2099 = vrot.lane.b32.xlu0 %v2088, 78
  %v2100 = vpop.permute.xlu0 %2099
  %v2101 = vsel %vm1967, %v2094, %v2096
  %v2102 = vsel %vm1967, %v2096, %v2098
  %v2103 = vsel %vm1967, %v2098, %v2100
  %v2107 = vadd.f32 %v2053, %v2101
  %v2108 = vadd.f32 %v2054, %v2102
  %v2109 = vadd.f32 %v2055, %v2103
  %2110 = vset.pattern.permute.xlu0 3
  %2111 = vperm.xlu0 %2110, %v1945
  %v2112 = vpop.permute.xlu0 %2111
  %v2114 = vmul.f32 %v2112, %v535
  %v2115 = vmul.f32 %v2112, %v539
  %v2116 = vmul.f32 %v2112, %v543
  %v2117 = vmul.f32 %v2112, %v547
  %2122 = vrot.lane.b32.xlu0 %v2114, 78
  %v2123 = vpop.permute.xlu0 %2122
  %2124 = vrot.lane.b32.xlu0 %v2115, 78
  %v2125 = vpop.permute.xlu0 %2124
  %2126 = vrot.lane.b32.xlu0 %v2116, 78
  %v2127 = vpop.permute.xlu0 %2126
  %2128 = vrot.lane.b32.xlu0 %v2117, 78
  %v2129 = vpop.permute.xlu0 %2128
  %v2130 = vsel %vm1967, %v2123, %v2125
  %v2131 = vsel %vm1967, %v2125, %v2127
  %v2132 = vsel %vm1967, %v2127, %v2129
  %v2136 = vadd.f32 %v2082, %v2130
  %v2137 = vadd.f32 %v2083, %v2131
  %v2138 = vadd.f32 %v2084, %v2132
  %v2139 = vmul.f32 %v2112, %v582
  %v2140 = vmul.f32 %v2112, %v586
  %v2141 = vmul.f32 %v2112, %v590
  %v2142 = vmul.f32 %v2112, %v594
  %2147 = vrot.lane.b32.xlu0 %v2139, 78
  %v2148 = vpop.permute.xlu0 %2147
  %2149 = vrot.lane.b32.xlu0 %v2140, 78
  %v2150 = vpop.permute.xlu0 %2149
  %2151 = vrot.lane.b32.xlu0 %v2141, 78
  %v2152 = vpop.permute.xlu0 %2151
  %2153 = vrot.lane.b32.xlu0 %v2142, 78
  %v2154 = vpop.permute.xlu0 %2153
  %v2155 = vsel %vm1967, %v2148, %v2150
  %v2156 = vsel %vm1967, %v2150, %v2152
  %v2157 = vsel %vm1967, %v2152, %v2154
  %v2161 = vadd.f32 %v2107, %v2155
  %v2162 = vadd.f32 %v2108, %v2156
  %v2163 = vadd.f32 %v2109, %v2157
  %2165 = vset.pattern.permute.xlu0 0
  %2166 = vperm.xlu0 %2165, %v17
  %v2167 = vpop.permute.xlu0 %2166
  %v2169 = vmul.f32 %v2136, %v2167
  %v2170 = vmul.f32 %v2137, %v2167
  %v2171 = vmul.f32 %v2138, %v2167
  %2173 = vset.pattern.permute.xlu0 0
  %2174 = vperm.xlu0 %2173, %v18
  %v2175 = vpop.permute.xlu0 %2174
  %v2177 = vadd.f32 %v2169, %v2175
  %v2178 = vadd.f32 %v2170, %v2175
  %v2179 = vadd.f32 %v2171, %v2175
  %v2180 = vmax.f32 %v2177, 0.0
  %v2181 = vmax.f32 %v2178, 0.0
  %v2182 = vmax.f32 %v2179, 0.0
  %2183 = vst [vmem:[%s4] sm:$0xff] %v2180
  %2184 = vst [vmem:[%s4 + $0x8] sm:$0xff] %v2181
  %2185 = vst [vmem:[%s4 + $0x10] sm:$0xff] %v2182
  %v2186 = vmul.f32 %v2161, %v2167
  %v2187 = vmul.f32 %v2162, %v2167
  %v2188 = vmul.f32 %v2163, %v2167
  %v2189 = vadd.f32 %v2186, %v2175
  %v2190 = vadd.f32 %v2187, %v2175
  %v2191 = vadd.f32 %v2188, %v2175
  %v2192 = vmax.f32 %v2189, 0.0
  %v2193 = vmax.f32 %v2190, 0.0
  %v2194 = vmax.f32 %v2191, 0.0
  %s2195 = scalar_lea.vmem %s4, 24
  %2196 = vst [vmem:[%s2195] sm:$0xff] %v2192
  %2197 = vst [vmem:[%s2195 + $0x8] sm:$0xff] %v2193
  %2198 = vst [vmem:[%s2195 + $0x10] sm:$0xff] %v2194
  // Predicated region
  $region18: #{conlevel_pallas.1} parent=0 // pred_check
    _
  $region19: #{conlevel_pallas.1} parent=0 // pred_check_branch
    %2200 = sbr.rel (0) target = $region21
  $region20: #{conlevel_pallas.1} parent=0 // pred_region
    _
  $region21: #{conlevel_pallas.1} parent=0 // pred_fallthru
    _
  // Predicated region
  $region22: #{conlevel_pallas.1} parent=0 // pred_check
    _
  $region23: #{conlevel_pallas.1} parent=0 // pred_check_branch
    %2202 = sbr.rel (0) target = $region25
  $region24: #{conlevel_pallas.1} parent=0 // pred_region
    _
  $region25: #{conlevel_pallas.1} parent=0 // pred_fallthru
    _

</llo_original>
